<compile_context>
chip_gen: v5e
topology: v5e:2x2
jax: 0.10.0
libtpu: 0.0.40
codegen_flags: <defaults>
</compile_context>

<pallas_src>
import math
import jax
import jax.numpy as jnp
from jax.experimental import pallas as pl
from jax.experimental.pallas import tpu as pltpu  # noqa: F401  (TPU backend)

D_MODEL = 32
N_HEADS = 4
D_K = D_MODEL // N_HEADS
D_FF = 64
N_LAYERS = 2
EPS = 1e-6
NEG_INF = 1e9
USE_APPROX_RECIP = True   # EUP approx reciprocal; set False for exact divides


def _recip(x):
    return pl.reciprocal(x, approx=True) if USE_APPROX_RECIP else 1.0 / x


def _layernorm(x, a, b):
    # a * (x - mean) / (std + eps) + b, with UNBIASED std (ddof=1) and eps added
    # to std (not var) -- matches the annotated-transformer LayerNorm exactly.
    mean = jnp.mean(x, axis=-1, keepdims=True)
    var = jnp.sum((x - mean) ** 2, axis=-1, keepdims=True) / (x.shape[-1] - 1)
    std = jnp.sqrt(var)
    return a * (x - mean) * _recip(std + EPS) + b


def encoder_kernel(x_ref, mask_ref,
                   wqkv_ref, wo_ref, w1_ref, w2_ref,
                   ln_ref, bqkv_ref, bvec_ref, b1_ref, fn_ref,
                   out_ref):
    B, S, D = x_ref.shape
    BS = B * S
    scale = 1.0 / math.sqrt(D_K)

    x = x_ref[...].reshape(BS, D)                       # (B*S, D) row slab
    # Additive mask bias, hoisted out of the layer/head loops:
    #   0 where mask==1, -1e9 where mask==0 (same magnitude as masked_fill).
    attn_bias = jnp.broadcast_to((mask_ref[...] - 1.0) * NEG_INF, (B, S, S))

    for l in range(N_LAYERS):                           # static unroll (N_LAYERS=2)
        ln = ln_ref[l]                                  # (4, D): ln1_a, ln1_b, ln2_a, ln2_b
        bvec = bvec_ref[l]                              # (2, D): b_o, b_2

        # ---- sublayer 1: x + SelfAttn(LayerNorm(x)) ----
        xn = _layernorm(x, ln[0:1], ln[1:2])
        qkv = jnp.dot(xn, wqkv_ref[l],
                      preferred_element_type=jnp.float32) + bqkv_ref[l]   # (BS, 3D)
        q = qkv[:, 0 * D:1 * D].reshape(B, S, D)
        k = qkv[:, 1 * D:2 * D].reshape(B, S, D)
        v = qkv[:, 2 * D:3 * D].reshape(B, S, D)

        attn = jnp.zeros((BS, D), jnp.float32)
        for h in range(N_HEADS):                        # static unroll over heads
            sl = slice(h * D_K, (h + 1) * D_K)
            s = jnp.einsum('bqd,bkd->bqk', q[:, :, sl], k[:, :, sl],
                           preferred_element_type=jnp.float32) * scale   # (B,S,S)
            s = s + attn_bias
            s = s - jnp.max(s, axis=-1, keepdims=True)
            p = jnp.exp(s)
            p = p * _recip(jnp.sum(p, axis=-1, keepdims=True))
            ctx = jnp.einsum('bqk,bkd->bqd', p, v[:, :, sl],
                             preferred_element_type=jnp.float32)         # (B,S,dk)
            # concat-free output projection: concat(heads) @ Wo == sum_h ctx_h @ Wo[h]
            attn = attn + jnp.dot(ctx.reshape(BS, D_K), wo_ref[l, h],
                                  preferred_element_type=jnp.float32)
        x = x + attn + bvec[0:1]                        # + b_o; dropout = identity

        # ---- sublayer 2: x + FFN(LayerNorm(x)) ----
        xn2 = _layernorm(x, ln[2:3], ln[3:4])
        h1 = jnp.maximum(
            jnp.dot(xn2, w1_ref[l], preferred_element_type=jnp.float32) + b1_ref[l],
            0.0)
        x = x + jnp.dot(h1, w2_ref[l], preferred_element_type=jnp.float32) + bvec[1:2]

    # ---- final LayerNorm ----
    y = _layernorm(x, fn_ref[0:1], fn_ref[1:2])
    out_ref[...] = y.reshape(B, S, D).astype(out_ref.dtype)


@jax.jit
def encoder_forward(x, mask, w_qkv, w_o, w_1, w_2, ln, b_qkv, b_vec, b_1, fn_ab):
    """Whole encoder (N_LAYERS layers + final LayerNorm) in ONE pallas_call.

    x: (B, S, D) f32; mask: (B, 1, S) f32 (1.0 = attend, 0.0 = padding).
    All parameter arrays carry a leading layer axis; the whole footprint
    (~50 KiB) fits VMEM, so there is no grid and no BlockSpec tiling.
    """
    B, S, D = x.shape
    return pl.pallas_call(
        encoder_kernel,
        out_shape=jax.ShapeDtypeStruct((B, S, D), x.dtype),
    )(x, mask, w_qkv, w_o, w_1, w_2, ln, b_qkv, b_vec, b_1, fn_ab)


def make_params(key):
    def w(k, shape):
        return 0.05 * jax.random.normal(k, shape, jnp.float32)

    ones = jnp.ones((D_MODEL,), jnp.float32)
    zeros = jnp.zeros((D_MODEL,), jnp.float32)
    layer_keys = jax.random.split(key, N_LAYERS)

    wqkv_l, wo_l, w1_l, w2_l, ln_l, bqkv_l, bvec_l, b1_l = ([] for _ in range(8))
    for i in range(N_LAYERS):
        ks = jax.random.split(layer_keys[i], 6)
        Wq = w(ks[0], (D_MODEL, D_MODEL))
        Wk = w(ks[1], (D_MODEL, D_MODEL))
        Wv = w(ks[2], (D_MODEL, D_MODEL))
        Wo = w(ks[3], (D_MODEL, D_MODEL))
        W1 = w(ks[4], (D_MODEL, D_FF))
        W2 = w(ks[5], (D_FF, D_MODEL))

        wqkv_l.append(jnp.concatenate([Wq, Wk, Wv], axis=1))       # (D, 3D) fused QKV
        wo_l.append(Wo.reshape(N_HEADS, D_K, D_MODEL))             # (H, dk, D) per-head slices
        w1_l.append(W1)
        w2_l.append(W2)
        ln_l.append(jnp.stack([ones, zeros, ones, zeros]))         # ln1_a, ln1_b, ln2_a, ln2_b
        bqkv_l.append(jnp.zeros((1, 3 * D_MODEL), jnp.float32))    # b_q | b_k | b_v
        bvec_l.append(jnp.stack([zeros, zeros]))                   # b_o, b_2
        b1_l.append(jnp.zeros((1, D_FF), jnp.float32))

    stacked = tuple(jnp.stack(lst) for lst in
                    (wqkv_l, wo_l, w1_l, w2_l, ln_l, bqkv_l, bvec_l, b1_l))
    fn_ab = jnp.stack([ones, zeros])                               # final-norm a, b (2, D)
    return stacked, fn_ab


if __name__ == "__main__":
    B, S = 2, 8
    key = jax.random.PRNGKey(0)
    kx, kp = jax.random.split(key)

    x = jax.random.normal(kx, (B, S, D_MODEL), jnp.float32)
    # mask: (B, 1, S) -- 1.0 = valid token, 0.0 = padding (last 2 tokens of batch 1 padded)
    mask = jnp.ones((B, 1, S), jnp.float32).at[1, 0, S - 2:].set(0.0)

    stacked, fn_ab = make_params(kp)

    out = encoder_forward(x, mask, *stacked, fn_ab)
    jax.block_until_ready(out)
    assert out.shape == (B, S, D_MODEL)
    assert jnp.all(jnp.isfinite(out))
    print("KERNEL_OK")
</pallas_src>

<mosaic_0001>
module attributes {stable_mosaic.version = 11 : i64} {
  func.func @encoder_kernel(%arg0: memref<2x8x32xf32, #tpu.memory_space<vmem>>, %arg1: memref<2x1x8xf32, #tpu.memory_space<vmem>>, %arg2: memref<2x32x96xf32, #tpu.memory_space<vmem>>, %arg3: memref<2x4x8x32xf32, #tpu.memory_space<vmem>>, %arg4: memref<2x32x64xf32, #tpu.memory_space<vmem>>, %arg5: memref<2x64x32xf32, #tpu.memory_space<vmem>>, %arg6: memref<2x4x32xf32, #tpu.memory_space<vmem>>, %arg7: memref<2x1x96xf32, #tpu.memory_space<vmem>>, %arg8: memref<2x2x32xf32, #tpu.memory_space<vmem>>, %arg9: memref<2x1x64xf32, #tpu.memory_space<vmem>>, %arg10: memref<2x32xf32, #tpu.memory_space<vmem>>, %arg11: memref<2x8x32xf32, #tpu.memory_space<vmem>>) attributes {dimension_semantics = [], scalar_prefetch = 0 : i64, scratch_operands = 0 : i64, tpu.core_type = #tpu.core_type<tc>} {
    %c0 = arith.constant 0 : index
    %c0_0 = arith.constant 0 : index
    %c0_1 = arith.constant 0 : index
    %0 = vector.load %arg0[%c0, %c0_0, %c0_1] : memref<2x8x32xf32, #tpu.memory_space<vmem>>, vector<2x8x32xf32>
    %1 = vector.shape_cast %0 : vector<2x8x32xf32> to vector<16x32xf32>
    %c0_2 = arith.constant 0 : index
    %c0_3 = arith.constant 0 : index
    %c0_4 = arith.constant 0 : index
    %2 = vector.load %arg1[%c0_2, %c0_3, %c0_4] : memref<2x1x8xf32, #tpu.memory_space<vmem>>, vector<2x1x8xf32>
    %cst = arith.constant 1.000000e+00 : f32
    %3 = vector.broadcast %cst : f32 to vector<2x1x8xf32>
    %4 = arith.subf %2, %3 : vector<2x1x8xf32>
    %cst_5 = arith.constant 1.000000e+09 : f32
    %5 = vector.broadcast %cst_5 : f32 to vector<2x1x8xf32>
    %6 = arith.mulf %4, %5 : vector<2x1x8xf32>
    %7 = vector.shape_cast %6 : vector<2x1x8xf32> to vector<2x1x8xf32>
    %8 = vector.broadcast %7 : vector<2x1x8xf32> to vector<2x8x8xf32>
    %c0_6 = arith.constant 0 : index
    %c0_7 = arith.constant 0 : index
    %c0_8 = arith.constant 0 : index
    %9 = vector.load %arg6[%c0_6, %c0_7, %c0_8] : memref<2x4x32xf32, #tpu.memory_space<vmem>>, vector<1x4x32xf32>
    %10 = vector.shape_cast %9 : vector<1x4x32xf32> to vector<4x32xf32>
    %c0_9 = arith.constant 0 : index
    %c0_10 = arith.constant 0 : index
    %c0_11 = arith.constant 0 : index
    %11 = vector.load %arg8[%c0_9, %c0_10, %c0_11] : memref<2x2x32xf32, #tpu.memory_space<vmem>>, vector<1x2x32xf32>
    %12 = vector.shape_cast %11 : vector<1x2x32xf32> to vector<2x32xf32>
    %13 = vector.extract_strided_slice %10 {offsets = [0, 0], sizes = [1, 32], strides = [1, 1]} : vector<4x32xf32> to vector<1x32xf32>
    %14 = vector.extract_strided_slice %10 {offsets = [1, 0], sizes = [1, 32], strides = [1, 1]} : vector<4x32xf32> to vector<1x32xf32>
    %cst_12 = arith.constant dense<0.000000e+00> : vector<16xf32>
    %15 = vector.multi_reduction <add>, %1, %cst_12 [1] : vector<16x32xf32> to vector<16xf32>
    %16 = vector.shape_cast %15 : vector<16xf32> to vector<16x1xf32>
    %cst_13 = arith.constant 3.200000e+01 : f32
    %17 = vector.broadcast %cst_13 : f32 to vector<16x1xf32>
    %18 = arith.divf %16, %17 : vector<16x1xf32>
    %19 = vector.broadcast %18 : vector<16x1xf32> to vector<16x32xf32>
    %20 = arith.subf %1, %19 : vector<16x32xf32>
    %21 = arith.mulf %20, %20 : vector<16x32xf32>
    %cst_14 = arith.constant dense<0.000000e+00> : vector<16xf32>
    %22 = vector.multi_reduction <add>, %21, %cst_14 [1] : vector<16x32xf32> to vector<16xf32>
    %23 = vector.shape_cast %22 : vector<16xf32> to vector<16x1xf32>
    %cst_15 = arith.constant 3.100000e+01 : f32
    %24 = vector.broadcast %cst_15 : f32 to vector<16x1xf32>
    %25 = arith.divf %23, %24 : vector<16x1xf32>
    %26 = math.sqrt %25 : vector<16x1xf32>
    %27 = vector.broadcast %18 : vector<16x1xf32> to vector<16x32xf32>
    %28 = arith.subf %1, %27 : vector<16x32xf32>
    %29 = vector.broadcast %13 : vector<1x32xf32> to vector<16x32xf32>
    %30 = arith.mulf %29, %28 : vector<16x32xf32>
    %cst_16 = arith.constant 9.99999997E-7 : f32
    %31 = vector.broadcast %cst_16 : f32 to vector<16x1xf32>
    %32 = arith.addf %26, %31 : vector<16x1xf32>
    %33 = tpu.reciprocal %32 {approx = true} : vector<16x1xf32> -> vector<16x1xf32>
    %34 = vector.broadcast %33 : vector<16x1xf32> to vector<16x32xf32>
    %35 = arith.mulf %30, %34 : vector<16x32xf32>
    %36 = vector.broadcast %14 : vector<1x32xf32> to vector<16x32xf32>
    %37 = arith.addf %35, %36 : vector<16x32xf32>
    %c0_17 = arith.constant 0 : index
    %c0_18 = arith.constant 0 : index
    %c0_19 = arith.constant 0 : index
    %38 = vector.load %arg2[%c0_17, %c0_18, %c0_19] : memref<2x32x96xf32, #tpu.memory_space<vmem>>, vector<1x32x96xf32>
    %39 = vector.shape_cast %38 : vector<1x32x96xf32> to vector<32x96xf32>
    %cst_20 = arith.constant dense<0.000000e+00> : vector<16x96xf32>
    %40 = tpu.matmul %37, %39, %cst_20 {dimension_numbers = #tpu.dot_dimension_numbers<[1], [0], [0], [1], [0, 0, 1, 1], [], []>} : vector<16x32xf32>, vector<32x96xf32>, vector<16x96xf32> -> vector<16x96xf32>
    %c0_21 = arith.constant 0 : index
    %c0_22 = arith.constant 0 : index
    %c0_23 = arith.constant 0 : index
    %41 = vector.load %arg7[%c0_21, %c0_22, %c0_23] : memref<2x1x96xf32, #tpu.memory_space<vmem>>, vector<1x1x96xf32>
    %42 = vector.shape_cast %41 : vector<1x1x96xf32> to vector<1x96xf32>
    %43 = vector.broadcast %42 : vector<1x96xf32> to vector<16x96xf32>
    %44 = arith.addf %40, %43 : vector<16x96xf32>
    %45 = vector.extract_strided_slice %44 {offsets = [0, 0], sizes = [16, 32], strides = [1, 1]} : vector<16x96xf32> to vector<16x32xf32>
    %46 = vector.shape_cast %45 : vector<16x32xf32> to vector<2x8x32xf32>
    %47 = vector.extract_strided_slice %44 {offsets = [0, 32], sizes = [16, 32], strides = [1, 1]} : vector<16x96xf32> to vector<16x32xf32>
    %48 = vector.shape_cast %47 : vector<16x32xf32> to vector<2x8x32xf32>
    %49 = vector.extract_strided_slice %44 {offsets = [0, 64], sizes = [16, 32], strides = [1, 1]} : vector<16x96xf32> to vector<16x32xf32>
    %50 = vector.shape_cast %49 : vector<16x32xf32> to vector<2x8x32xf32>
    %cst_24 = arith.constant 0.000000e+00 : f32
    %51 = vector.broadcast %cst_24 : f32 to vector<16x32xf32>
    %52 = vector.extract_strided_slice %46 {offsets = [0, 0, 0], sizes = [2, 8, 8], strides = [1, 1, 1]} : vector<2x8x32xf32> to vector<2x8x8xf32>
    %53 = vector.extract_strided_slice %48 {offsets = [0, 0, 0], sizes = [2, 8, 8], strides = [1, 1, 1]} : vector<2x8x32xf32> to vector<2x8x8xf32>
    "tpu.trace_start"() <{level = 10 : i32, message = "bqd,bkd->bqk"}> : () -> ()
    %cst_25 = arith.constant dense<0.000000e+00> : vector<2x8x8xf32>
    %54 = tpu.matmul %52, %53, %cst_25 {dimension_numbers = #tpu.dot_dimension_numbers<[2], [2], [1], [1], [0, 0, 0, 1, 1, 1], [0], [0]>} : vector<2x8x8xf32>, vector<2x8x8xf32>, vector<2x8x8xf32> -> vector<2x8x8xf32>
    "tpu.trace_stop"() : () -> ()
    %cst_26 = arith.constant 0.353553385 : f32
    %55 = vector.broadcast %cst_26 : f32 to vector<2x8x8xf32>
    %56 = arith.mulf %54, %55 : vector<2x8x8xf32>
    %57 = arith.addf %56, %8 : vector<2x8x8xf32>
    %cst_27 = arith.constant dense<0xFF800000> : vector<2x8xf32>
    %58 = vector.multi_reduction <maximumf>, %57, %cst_27 [2] : vector<2x8x8xf32> to vector<2x8xf32>
    %59 = vector.shape_cast %58 : vector<2x8xf32> to vector<2x8x1xf32>
    %60 = vector.broadcast %59 : vector<2x8x1xf32> to vector<2x8x8xf32>
    %61 = arith.subf %57, %60 : vector<2x8x8xf32>
    %62 = math.exp %61 : vector<2x8x8xf32>
    %cst_28 = arith.constant dense<0.000000e+00> : vector<2x8xf32>
    %63 = vector.multi_reduction <add>, %62, %cst_28 [2] : vector<2x8x8xf32> to vector<2x8xf32>
    %64 = vector.shape_cast %63 : vector<2x8xf32> to vector<2x8x1xf32>
    %65 = tpu.reciprocal %64 {approx = true} : vector<2x8x1xf32> -> vector<2x8x1xf32>
    %66 = vector.broadcast %65 : vector<2x8x1xf32> to vector<2x8x8xf32>
    %67 = arith.mulf %62, %66 : vector<2x8x8xf32>
    %68 = vector.extract_strided_slice %50 {offsets = [0, 0, 0], sizes = [2, 8, 8], strides = [1, 1, 1]} : vector<2x8x32xf32> to vector<2x8x8xf32>
    "tpu.trace_start"() <{level = 10 : i32, message = "bqk,bkd->bqd"}> : () -> ()
    %cst_29 = arith.constant dense<0.000000e+00> : vector<2x8x8xf32>
    %69 = tpu.matmul %67, %68, %cst_29 {dimension_numbers = #tpu.dot_dimension_numbers<[2], [1], [1], [2], [0, 0, 0, 1, 1, 2], [0], [0]>} : vector<2x8x8xf32>, vector<2x8x8xf32>, vector<2x8x8xf32> -> vector<2x8x8xf32>
    "tpu.trace_stop"() : () -> ()
    %70 = vector.shape_cast %69 : vector<2x8x8xf32> to vector<16x8xf32>
    %c0_30 = arith.constant 0 : index
    %c0_31 = arith.constant 0 : index
    %c0_32 = arith.constant 0 : index
    %c0_33 = arith.constant 0 : index
    %71 = vector.load %arg3[%c0_30, %c0_31, %c0_32, %c0_33] : memref<2x4x8x32xf32, #tpu.memory_space<vmem>>, vector<1x1x8x32xf32>
    %72 = vector.shape_cast %71 : vector<1x1x8x32xf32> to vector<8x32xf32>
    %cst_34 = arith.constant dense<0.000000e+00> : vector<16x32xf32>
    %73 = tpu.matmul %70, %72, %cst_34 {dimension_numbers = #tpu.dot_dimension_numbers<[1], [0], [0], [1], [0, 0, 1, 1], [], []>} : vector<16x8xf32>, vector<8x32xf32>, vector<16x32xf32> -> vector<16x32xf32>
    %74 = arith.addf %51, %73 : vector<16x32xf32>
    %75 = vector.extract_strided_slice %46 {offsets = [0, 0, 8], sizes = [2, 8, 8], strides = [1, 1, 1]} : vector<2x8x32xf32> to vector<2x8x8xf32>
    %76 = vector.extract_strided_slice %48 {offsets = [0, 0, 8], sizes = [2, 8, 8], strides = [1, 1, 1]} : vector<2x8x32xf32> to vector<2x8x8xf32>
    "tpu.trace_start"() <{level = 10 : i32, message = "bqd,bkd->bqk"}> : () -> ()
    %cst_35 = arith.constant dense<0.000000e+00> : vector<2x8x8xf32>
    %77 = tpu.matmul %75, %76, %cst_35 {dimension_numbers = #tpu.dot_dimension_numbers<[2], [2], [1], [1], [0, 0, 0, 1, 1, 1], [0], [0]>} : vector<2x8x8xf32>, vector<2x8x8xf32>, vector<2x8x8xf32> -> vector<2x8x8xf32>
    "tpu.trace_stop"() : () -> ()
    %cst_36 = arith.constant 0.353553385 : f32
    %78 = vector.broadcast %cst_36 : f32 to vector<2x8x8xf32>
    %79 = arith.mulf %77, %78 : vector<2x8x8xf32>
    %80 = arith.addf %79, %8 : vector<2x8x8xf32>
    %cst_37 = arith.constant dense<0xFF800000> : vector<2x8xf32>
    %81 = vector.multi_reduction <maximumf>, %80, %cst_37 [2] : vector<2x8x8xf32> to vector<2x8xf32>
    %82 = vector.shape_cast %81 : vector<2x8xf32> to vector<2x8x1xf32>
    %83 = vector.broadcast %82 : vector<2x8x1xf32> to vector<2x8x8xf32>
    %84 = arith.subf %80, %83 : vector<2x8x8xf32>
    %85 = math.exp %84 : vector<2x8x8xf32>
    %cst_38 = arith.constant dense<0.000000e+00> : vector<2x8xf32>
    %86 = vector.multi_reduction <add>, %85, %cst_38 [2] : vector<2x8x8xf32> to vector<2x8xf32>
    %87 = vector.shape_cast %86 : vector<2x8xf32> to vector<2x8x1xf32>
    %88 = tpu.reciprocal %87 {approx = true} : vector<2x8x1xf32> -> vector<2x8x1xf32>
    %89 = vector.broadcast %88 : vector<2x8x1xf32> to vector<2x8x8xf32>
    %90 = arith.mulf %85, %89 : vector<2x8x8xf32>
    %91 = vector.extract_strided_slice %50 {offsets = [0, 0, 8], sizes = [2, 8, 8], strides = [1, 1, 1]} : vector<2x8x32xf32> to vector<2x8x8xf32>
    "tpu.trace_start"() <{level = 10 : i32, message = "bqk,bkd->bqd"}> : () -> ()
    %cst_39 = arith.constant dense<0.000000e+00> : vector<2x8x8xf32>
    %92 = tpu.matmul %90, %91, %cst_39 {dimension_numbers = #tpu.dot_dimension_numbers<[2], [1], [1], [2], [0, 0, 0, 1, 1, 2], [0], [0]>} : vector<2x8x8xf32>, vector<2x8x8xf32>, vector<2x8x8xf32> -> vector<2x8x8xf32>
    "tpu.trace_stop"() : () -> ()
    %93 = vector.shape_cast %92 : vector<2x8x8xf32> to vector<16x8xf32>
    %c0_40 = arith.constant 0 : index
    %c1 = arith.constant 1 : index
    %c0_41 = arith.constant 0 : index
    %c0_42 = arith.constant 0 : index
    %94 = vector.load %arg3[%c0_40, %c1, %c0_41, %c0_42] : memref<2x4x8x32xf32, #tpu.memory_space<vmem>>, vector<1x1x8x32xf32>
    %95 = vector.shape_cast %94 : vector<1x1x8x32xf32> to vector<8x32xf32>
    %cst_43 = arith.constant dense<0.000000e+00> : vector<16x32xf32>
    %96 = tpu.matmul %93, %95, %cst_43 {dimension_numbers = #tpu.dot_dimension_numbers<[1], [0], [0], [1], [0, 0, 1, 1], [], []>} : vector<16x8xf32>, vector<8x32xf32>, vector<16x32xf32> -> vector<16x32xf32>
    %97 = arith.addf %74, %96 : vector<16x32xf32>
    %98 = vector.extract_strided_slice %46 {offsets = [0, 0, 16], sizes = [2, 8, 8], strides = [1, 1, 1]} : vector<2x8x32xf32> to vector<2x8x8xf32>
    %99 = vector.extract_strided_slice %48 {offsets = [0, 0, 16], sizes = [2, 8, 8], strides = [1, 1, 1]} : vector<2x8x32xf32> to vector<2x8x8xf32>
    "tpu.trace_start"() <{level = 10 : i32, message = "bqd,bkd->bqk"}> : () -> ()
    %cst_44 = arith.constant dense<0.000000e+00> : vector<2x8x8xf32>
    %100 = tpu.matmul %98, %99, %cst_44 {dimension_numbers = #tpu.dot_dimension_numbers<[2], [2], [1], [1], [0, 0, 0, 1, 1, 1], [0], [0]>} : vector<2x8x8xf32>, vector<2x8x8xf32>, vector<2x8x8xf32> -> vector<2x8x8xf32>
    "tpu.trace_stop"() : () -> ()
    %cst_45 = arith.constant 0.353553385 : f32
    %101 = vector.broadcast %cst_45 : f32 to vector<2x8x8xf32>
    %102 = arith.mulf %100, %101 : vector<2x8x8xf32>
    %103 = arith.addf %102, %8 : vector<2x8x8xf32>
    %cst_46 = arith.constant dense<0xFF800000> : vector<2x8xf32>
    %104 = vector.multi_reduction <maximumf>, %103, %cst_46 [2] : vector<2x8x8xf32> to vector<2x8xf32>
    %105 = vector.shape_cast %104 : vector<2x8xf32> to vector<2x8x1xf32>
    %106 = vector.broadcast %105 : vector<2x8x1xf32> to vector<2x8x8xf32>
    %107 = arith.subf %103, %106 : vector<2x8x8xf32>
    %108 = math.exp %107 : vector<2x8x8xf32>
    %cst_47 = arith.constant dense<0.000000e+00> : vector<2x8xf32>
    %109 = vector.multi_reduction <add>, %108, %cst_47 [2] : vector<2x8x8xf32> to vector<2x8xf32>
    %110 = vector.shape_cast %109 : vector<2x8xf32> to vector<2x8x1xf32>
    %111 = tpu.reciprocal %110 {approx = true} : vector<2x8x1xf32> -> vector<2x8x1xf32>
    %112 = vector.broadcast %111 : vector<2x8x1xf32> to vector<2x8x8xf32>
    %113 = arith.mulf %108, %112 : vector<2x8x8xf32>
    %114 = vector.extract_strided_slice %50 {offsets = [0, 0, 16], sizes = [2, 8, 8], strides = [1, 1, 1]} : vector<2x8x32xf32> to vector<2x8x8xf32>
    "tpu.trace_start"() <{level = 10 : i32, message = "bqk,bkd->bqd"}> : () -> ()
    %cst_48 = arith.constant dense<0.000000e+00> : vector<2x8x8xf32>
    %115 = tpu.matmul %113, %114, %cst_48 {dimension_numbers = #tpu.dot_dimension_numbers<[2], [1], [1], [2], [0, 0, 0, 1, 1, 2], [0], [0]>} : vector<2x8x8xf32>, vector<2x8x8xf32>, vector<2x8x8xf32> -> vector<2x8x8xf32>
    "tpu.trace_stop"() : () -> ()
    %116 = vector.shape_cast %115 : vector<2x8x8xf32> to vector<16x8xf32>
    %c0_49 = arith.constant 0 : index
    %c2 = arith.constant 2 : index
    %c0_50 = arith.constant 0 : index
    %c0_51 = arith.constant 0 : index
    %117 = vector.load %arg3[%c0_49, %c2, %c0_50, %c0_51] : memref<2x4x8x32xf32, #tpu.memory_space<vmem>>, vector<1x1x8x32xf32>
    %118 = vector.shape_cast %117 : vector<1x1x8x32xf32> to vector<8x32xf32>
    %cst_52 = arith.constant dense<0.000000e+00> : vector<16x32xf32>
    %119 = tpu.matmul %116, %118, %cst_52 {dimension_numbers = #tpu.dot_dimension_numbers<[1], [0], [0], [1], [0, 0, 1, 1], [], []>} : vector<16x8xf32>, vector<8x32xf32>, vector<16x32xf32> -> vector<16x32xf32>
    %120 = arith.addf %97, %119 : vector<16x32xf32>
    %121 = vector.extract_strided_slice %46 {offsets = [0, 0, 24], sizes = [2, 8, 8], strides = [1, 1, 1]} : vector<2x8x32xf32> to vector<2x8x8xf32>
    %122 = vector.extract_strided_slice %48 {offsets = [0, 0, 24], sizes = [2, 8, 8], strides = [1, 1, 1]} : vector<2x8x32xf32> to vector<2x8x8xf32>
    "tpu.trace_start"() <{level = 10 : i32, message = "bqd,bkd->bqk"}> : () -> ()
    %cst_53 = arith.constant dense<0.000000e+00> : vector<2x8x8xf32>
    %123 = tpu.matmul %121, %122, %cst_53 {dimension_numbers = #tpu.dot_dimension_numbers<[2], [2], [1], [1], [0, 0, 0, 1, 1, 1], [0], [0]>} : vector<2x8x8xf32>, vector<2x8x8xf32>, vector<2x8x8xf32> -> vector<2x8x8xf32>
    "tpu.trace_stop"() : () -> ()
    %cst_54 = arith.constant 0.353553385 : f32
    %124 = vector.broadcast %cst_54 : f32 to vector<2x8x8xf32>
    %125 = arith.mulf %123, %124 : vector<2x8x8xf32>
    %126 = arith.addf %125, %8 : vector<2x8x8xf32>
    %cst_55 = arith.constant dense<0xFF800000> : vector<2x8xf32>
    %127 = vector.multi_reduction <maximumf>, %126, %cst_55 [2] : vector<2x8x8xf32> to vector<2x8xf32>
    %128 = vector.shape_cast %127 : vector<2x8xf32> to vector<2x8x1xf32>
    %129 = vector.broadcast %128 : vector<2x8x1xf32> to vector<2x8x8xf32>
    %130 = arith.subf %126, %129 : vector<2x8x8xf32>
    %131 = math.exp %130 : vector<2x8x8xf32>
    %cst_56 = arith.constant dense<0.000000e+00> : vector<2x8xf32>
    %132 = vector.multi_reduction <add>, %131, %cst_56 [2] : vector<2x8x8xf32> to vector<2x8xf32>
    %133 = vector.shape_cast %132 : vector<2x8xf32> to vector<2x8x1xf32>
    %134 = tpu.reciprocal %133 {approx = true} : vector<2x8x1xf32> -> vector<2x8x1xf32>
    %135 = vector.broadcast %134 : vector<2x8x1xf32> to vector<2x8x8xf32>
    %136 = arith.mulf %131, %135 : vector<2x8x8xf32>
    %137 = vector.extract_strided_slice %50 {offsets = [0, 0, 24], sizes = [2, 8, 8], strides = [1, 1, 1]} : vector<2x8x32xf32> to vector<2x8x8xf32>
    "tpu.trace_start"() <{level = 10 : i32, message = "bqk,bkd->bqd"}> : () -> ()
    %cst_57 = arith.constant dense<0.000000e+00> : vector<2x8x8xf32>
    %138 = tpu.matmul %136, %137, %cst_57 {dimension_numbers = #tpu.dot_dimension_numbers<[2], [1], [1], [2], [0, 0, 0, 1, 1, 2], [0], [0]>} : vector<2x8x8xf32>, vector<2x8x8xf32>, vector<2x8x8xf32> -> vector<2x8x8xf32>
    "tpu.trace_stop"() : () -> ()
    %139 = vector.shape_cast %138 : vector<2x8x8xf32> to vector<16x8xf32>
    %c0_58 = arith.constant 0 : index
    %c3 = arith.constant 3 : index
    %c0_59 = arith.constant 0 : index
    %c0_60 = arith.constant 0 : index
    %140 = vector.load %arg3[%c0_58, %c3, %c0_59, %c0_60] : memref<2x4x8x32xf32, #tpu.memory_space<vmem>>, vector<1x1x8x32xf32>
    %141 = vector.shape_cast %140 : vector<1x1x8x32xf32> to vector<8x32xf32>
    %cst_61 = arith.constant dense<0.000000e+00> : vector<16x32xf32>
    %142 = tpu.matmul %139, %141, %cst_61 {dimension_numbers = #tpu.dot_dimension_numbers<[1], [0], [0], [1], [0, 0, 1, 1], [], []>} : vector<16x8xf32>, vector<8x32xf32>, vector<16x32xf32> -> vector<16x32xf32>
    %143 = arith.addf %120, %142 : vector<16x32xf32>
    %144 = arith.addf %1, %143 : vector<16x32xf32>
    %145 = vector.extract_strided_slice %12 {offsets = [0, 0], sizes = [1, 32], strides = [1, 1]} : vector<2x32xf32> to vector<1x32xf32>
    %146 = vector.broadcast %145 : vector<1x32xf32> to vector<16x32xf32>
    %147 = arith.addf %144, %146 : vector<16x32xf32>
    %148 = vector.extract_strided_slice %10 {offsets = [2, 0], sizes = [1, 32], strides = [1, 1]} : vector<4x32xf32> to vector<1x32xf32>
    %149 = vector.extract_strided_slice %10 {offsets = [3, 0], sizes = [1, 32], strides = [1, 1]} : vector<4x32xf32> to vector<1x32xf32>
    %cst_62 = arith.constant dense<0.000000e+00> : vector<16xf32>
    %150 = vector.multi_reduction <add>, %147, %cst_62 [1] : vector<16x32xf32> to vector<16xf32>
    %151 = vector.shape_cast %150 : vector<16xf32> to vector<16x1xf32>
    %cst_63 = arith.constant 3.200000e+01 : f32
    %152 = vector.broadcast %cst_63 : f32 to vector<16x1xf32>
    %153 = arith.divf %151, %152 : vector<16x1xf32>
    %154 = vector.broadcast %153 : vector<16x1xf32> to vector<16x32xf32>
    %155 = arith.subf %147, %154 : vector<16x32xf32>
    %156 = arith.mulf %155, %155 : vector<16x32xf32>
    %cst_64 = arith.constant dense<0.000000e+00> : vector<16xf32>
    %157 = vector.multi_reduction <add>, %156, %cst_64 [1] : vector<16x32xf32> to vector<16xf32>
    %158 = vector.shape_cast %157 : vector<16xf32> to vector<16x1xf32>
    %cst_65 = arith.constant 3.100000e+01 : f32
    %159 = vector.broadcast %cst_65 : f32 to vector<16x1xf32>
    %160 = arith.divf %158, %159 : vector<16x1xf32>
    %161 = math.sqrt %160 : vector<16x1xf32>
    %162 = vector.broadcast %153 : vector<16x1xf32> to vector<16x32xf32>
    %163 = arith.subf %147, %162 : vector<16x32xf32>
    %164 = vector.broadcast %148 : vector<1x32xf32> to vector<16x32xf32>
    %165 = arith.mulf %164, %163 : vector<16x32xf32>
    %cst_66 = arith.constant 9.99999997E-7 : f32
    %166 = vector.broadcast %cst_66 : f32 to vector<16x1xf32>
    %167 = arith.addf %161, %166 : vector<16x1xf32>
    %168 = tpu.reciprocal %167 {approx = true} : vector<16x1xf32> -> vector<16x1xf32>
    %169 = vector.broadcast %168 : vector<16x1xf32> to vector<16x32xf32>
    %170 = arith.mulf %165, %169 : vector<16x32xf32>
    %171 = vector.broadcast %149 : vector<1x32xf32> to vector<16x32xf32>
    %172 = arith.addf %170, %171 : vector<16x32xf32>
    %c0_67 = arith.constant 0 : index
    %c0_68 = arith.constant 0 : index
    %c0_69 = arith.constant 0 : index
    %173 = vector.load %arg4[%c0_67, %c0_68, %c0_69] : memref<2x32x64xf32, #tpu.memory_space<vmem>>, vector<1x32x64xf32>
    %174 = vector.shape_cast %173 : vector<1x32x64xf32> to vector<32x64xf32>
    %cst_70 = arith.constant dense<0.000000e+00> : vector<16x64xf32>
    %175 = tpu.matmul %172, %174, %cst_70 {dimension_numbers = #tpu.dot_dimension_numbers<[1], [0], [0], [1], [0, 0, 1, 1], [], []>} : vector<16x32xf32>, vector<32x64xf32>, vector<16x64xf32> -> vector<16x64xf32>
    %c0_71 = arith.constant 0 : index
    %c0_72 = arith.constant 0 : index
    %c0_73 = arith.constant 0 : index
    %176 = vector.load %arg9[%c0_71, %c0_72, %c0_73] : memref<2x1x64xf32, #tpu.memory_space<vmem>>, vector<1x1x64xf32>
    %177 = vector.shape_cast %176 : vector<1x1x64xf32> to vector<1x64xf32>
    %178 = vector.broadcast %177 : vector<1x64xf32> to vector<16x64xf32>
    %179 = arith.addf %175, %178 : vector<16x64xf32>
    %cst_74 = arith.constant 0.000000e+00 : f32
    %180 = vector.broadcast %cst_74 : f32 to vector<16x64xf32>
    %181 = arith.maximumf %179, %180 : vector<16x64xf32>
    %c0_75 = arith.constant 0 : index
    %c0_76 = arith.constant 0 : index
    %c0_77 = arith.constant 0 : index
    %182 = vector.load %arg5[%c0_75, %c0_76, %c0_77] : memref<2x64x32xf32, #tpu.memory_space<vmem>>, vector<1x64x32xf32>
    %183 = vector.shape_cast %182 : vector<1x64x32xf32> to vector<64x32xf32>
    %cst_78 = arith.constant dense<0.000000e+00> : vector<16x32xf32>
    %184 = tpu.matmul %181, %183, %cst_78 {dimension_numbers = #tpu.dot_dimension_numbers<[1], [0], [0], [1], [0, 0, 1, 1], [], []>} : vector<16x64xf32>, vector<64x32xf32>, vector<16x32xf32> -> vector<16x32xf32>
    %185 = arith.addf %147, %184 : vector<16x32xf32>
    %186 = vector.extract_strided_slice %12 {offsets = [1, 0], sizes = [1, 32], strides = [1, 1]} : vector<2x32xf32> to vector<1x32xf32>
    %187 = vector.broadcast %186 : vector<1x32xf32> to vector<16x32xf32>
    %188 = arith.addf %185, %187 : vector<16x32xf32>
    %c1_79 = arith.constant 1 : index
    %c0_80 = arith.constant 0 : index
    %c0_81 = arith.constant 0 : index
    %189 = vector.load %arg6[%c1_79, %c0_80, %c0_81] : memref<2x4x32xf32, #tpu.memory_space<vmem>>, vector<1x4x32xf32>
    %190 = vector.shape_cast %189 : vector<1x4x32xf32> to vector<4x32xf32>
    %c1_82 = arith.constant 1 : index
    %c0_83 = arith.constant 0 : index
    %c0_84 = arith.constant 0 : index
    %191 = vector.load %arg8[%c1_82, %c0_83, %c0_84] : memref<2x2x32xf32, #tpu.memory_space<vmem>>, vector<1x2x32xf32>
    %192 = vector.shape_cast %191 : vector<1x2x32xf32> to vector<2x32xf32>
    %193 = vector.extract_strided_slice %190 {offsets = [0, 0], sizes = [1, 32], strides = [1, 1]} : vector<4x32xf32> to vector<1x32xf32>
    %194 = vector.extract_strided_slice %190 {offsets = [1, 0], sizes = [1, 32], strides = [1, 1]} : vector<4x32xf32> to vector<1x32xf32>
    %cst_85 = arith.constant dense<0.000000e+00> : vector<16xf32>
    %195 = vector.multi_reduction <add>, %188, %cst_85 [1] : vector<16x32xf32> to vector<16xf32>
    %196 = vector.shape_cast %195 : vector<16xf32> to vector<16x1xf32>
    %cst_86 = arith.constant 3.200000e+01 : f32
    %197 = vector.broadcast %cst_86 : f32 to vector<16x1xf32>
    %198 = arith.divf %196, %197 : vector<16x1xf32>
    %199 = vector.broadcast %198 : vector<16x1xf32> to vector<16x32xf32>
    %200 = arith.subf %188, %199 : vector<16x32xf32>
    %201 = arith.mulf %200, %200 : vector<16x32xf32>
    %cst_87 = arith.constant dense<0.000000e+00> : vector<16xf32>
    %202 = vector.multi_reduction <add>, %201, %cst_87 [1] : vector<16x32xf32> to vector<16xf32>
    %203 = vector.shape_cast %202 : vector<16xf32> to vector<16x1xf32>
    %cst_88 = arith.constant 3.100000e+01 : f32
    %204 = vector.broadcast %cst_88 : f32 to vector<16x1xf32>
    %205 = arith.divf %203, %204 : vector<16x1xf32>
    %206 = math.sqrt %205 : vector<16x1xf32>
    %207 = vector.broadcast %198 : vector<16x1xf32> to vector<16x32xf32>
    %208 = arith.subf %188, %207 : vector<16x32xf32>
    %209 = vector.broadcast %193 : vector<1x32xf32> to vector<16x32xf32>
    %210 = arith.mulf %209, %208 : vector<16x32xf32>
    %cst_89 = arith.constant 9.99999997E-7 : f32
    %211 = vector.broadcast %cst_89 : f32 to vector<16x1xf32>
    %212 = arith.addf %206, %211 : vector<16x1xf32>
    %213 = tpu.reciprocal %212 {approx = true} : vector<16x1xf32> -> vector<16x1xf32>
    %214 = vector.broadcast %213 : vector<16x1xf32> to vector<16x32xf32>
    %215 = arith.mulf %210, %214 : vector<16x32xf32>
    %216 = vector.broadcast %194 : vector<1x32xf32> to vector<16x32xf32>
    %217 = arith.addf %215, %216 : vector<16x32xf32>
    %c1_90 = arith.constant 1 : index
    %c0_91 = arith.constant 0 : index
    %c0_92 = arith.constant 0 : index
    %218 = vector.load %arg2[%c1_90, %c0_91, %c0_92] : memref<2x32x96xf32, #tpu.memory_space<vmem>>, vector<1x32x96xf32>
    %219 = vector.shape_cast %218 : vector<1x32x96xf32> to vector<32x96xf32>
    %cst_93 = arith.constant dense<0.000000e+00> : vector<16x96xf32>
    %220 = tpu.matmul %217, %219, %cst_93 {dimension_numbers = #tpu.dot_dimension_numbers<[1], [0], [0], [1], [0, 0, 1, 1], [], []>} : vector<16x32xf32>, vector<32x96xf32>, vector<16x96xf32> -> vector<16x96xf32>
    %c1_94 = arith.constant 1 : index
    %c0_95 = arith.constant 0 : index
    %c0_96 = arith.constant 0 : index
    %221 = vector.load %arg7[%c1_94, %c0_95, %c0_96] : memref<2x1x96xf32, #tpu.memory_space<vmem>>, vector<1x1x96xf32>
    %222 = vector.shape_cast %221 : vector<1x1x96xf32> to vector<1x96xf32>
    %223 = vector.broadcast %222 : vector<1x96xf32> to vector<16x96xf32>
    %224 = arith.addf %220, %223 : vector<16x96xf32>
    %225 = vector.extract_strided_slice %224 {offsets = [0, 0], sizes = [16, 32], strides = [1, 1]} : vector<16x96xf32> to vector<16x32xf32>
    %226 = vector.shape_cast %225 : vector<16x32xf32> to vector<2x8x32xf32>
    %227 = vector.extract_strided_slice %224 {offsets = [0, 32], sizes = [16, 32], strides = [1, 1]} : vector<16x96xf32> to vector<16x32xf32>
    %228 = vector.shape_cast %227 : vector<16x32xf32> to vector<2x8x32xf32>
    %229 = vector.extract_strided_slice %224 {offsets = [0, 64], sizes = [16, 32], strides = [1, 1]} : vector<16x96xf32> to vector<16x32xf32>
    %230 = vector.shape_cast %229 : vector<16x32xf32> to vector<2x8x32xf32>
    %cst_97 = arith.constant 0.000000e+00 : f32
    %231 = vector.broadcast %cst_97 : f32 to vector<16x32xf32>
    %232 = vector.extract_strided_slice %226 {offsets = [0, 0, 0], sizes = [2, 8, 8], strides = [1, 1, 1]} : vector<2x8x32xf32> to vector<2x8x8xf32>
    %233 = vector.extract_strided_slice %228 {offsets = [0, 0, 0], sizes = [2, 8, 8], strides = [1, 1, 1]} : vector<2x8x32xf32> to vector<2x8x8xf32>
    "tpu.trace_start"() <{level = 10 : i32, message = "bqd,bkd->bqk"}> : () -> ()
    %cst_98 = arith.constant dense<0.000000e+00> : vector<2x8x8xf32>
    %234 = tpu.matmul %232, %233, %cst_98 {dimension_numbers = #tpu.dot_dimension_numbers<[2], [2], [1], [1], [0, 0, 0, 1, 1, 1], [0], [0]>} : vector<2x8x8xf32>, vector<2x8x8xf32>, vector<2x8x8xf32> -> vector<2x8x8xf32>
    "tpu.trace_stop"() : () -> ()
    %cst_99 = arith.constant 0.353553385 : f32
    %235 = vector.broadcast %cst_99 : f32 to vector<2x8x8xf32>
    %236 = arith.mulf %234, %235 : vector<2x8x8xf32>
    %237 = arith.addf %236, %8 : vector<2x8x8xf32>
    %cst_100 = arith.constant dense<0xFF800000> : vector<2x8xf32>
    %238 = vector.multi_reduction <maximumf>, %237, %cst_100 [2] : vector<2x8x8xf32> to vector<2x8xf32>
    %239 = vector.shape_cast %238 : vector<2x8xf32> to vector<2x8x1xf32>
    %240 = vector.broadcast %239 : vector<2x8x1xf32> to vector<2x8x8xf32>
    %241 = arith.subf %237, %240 : vector<2x8x8xf32>
    %242 = math.exp %241 : vector<2x8x8xf32>
    %cst_101 = arith.constant dense<0.000000e+00> : vector<2x8xf32>
    %243 = vector.multi_reduction <add>, %242, %cst_101 [2] : vector<2x8x8xf32> to vector<2x8xf32>
    %244 = vector.shape_cast %243 : vector<2x8xf32> to vector<2x8x1xf32>
    %245 = tpu.reciprocal %244 {approx = true} : vector<2x8x1xf32> -> vector<2x8x1xf32>
    %246 = vector.broadcast %245 : vector<2x8x1xf32> to vector<2x8x8xf32>
    %247 = arith.mulf %242, %246 : vector<2x8x8xf32>
    %248 = vector.extract_strided_slice %230 {offsets = [0, 0, 0], sizes = [2, 8, 8], strides = [1, 1, 1]} : vector<2x8x32xf32> to vector<2x8x8xf32>
    "tpu.trace_start"() <{level = 10 : i32, message = "bqk,bkd->bqd"}> : () -> ()
    %cst_102 = arith.constant dense<0.000000e+00> : vector<2x8x8xf32>
    %249 = tpu.matmul %247, %248, %cst_102 {dimension_numbers = #tpu.dot_dimension_numbers<[2], [1], [1], [2], [0, 0, 0, 1, 1, 2], [0], [0]>} : vector<2x8x8xf32>, vector<2x8x8xf32>, vector<2x8x8xf32> -> vector<2x8x8xf32>
    "tpu.trace_stop"() : () -> ()
    %250 = vector.shape_cast %249 : vector<2x8x8xf32> to vector<16x8xf32>
    %c1_103 = arith.constant 1 : index
    %c0_104 = arith.constant 0 : index
    %c0_105 = arith.constant 0 : index
    %c0_106 = arith.constant 0 : index
    %251 = vector.load %arg3[%c1_103, %c0_104, %c0_105, %c0_106] : memref<2x4x8x32xf32, #tpu.memory_space<vmem>>, vector<1x1x8x32xf32>
    %252 = vector.shape_cast %251 : vector<1x1x8x32xf32> to vector<8x32xf32>
    %cst_107 = arith.constant dense<0.000000e+00> : vector<16x32xf32>
    %253 = tpu.matmul %250, %252, %cst_107 {dimension_numbers = #tpu.dot_dimension_numbers<[1], [0], [0], [1], [0, 0, 1, 1], [], []>} : vector<16x8xf32>, vector<8x32xf32>, vector<16x32xf32> -> vector<16x32xf32>
    %254 = arith.addf %231, %253 : vector<16x32xf32>
    %255 = vector.extract_strided_slice %226 {offsets = [0, 0, 8], sizes = [2, 8, 8], strides = [1, 1, 1]} : vector<2x8x32xf32> to vector<2x8x8xf32>
    %256 = vector.extract_strided_slice %228 {offsets = [0, 0, 8], sizes = [2, 8, 8], strides = [1, 1, 1]} : vector<2x8x32xf32> to vector<2x8x8xf32>
    "tpu.trace_start"() <{level = 10 : i32, message = "bqd,bkd->bqk"}> : () -> ()
    %cst_108 = arith.constant dense<0.000000e+00> : vector<2x8x8xf32>
    %257 = tpu.matmul %255, %256, %cst_108 {dimension_numbers = #tpu.dot_dimension_numbers<[2], [2], [1], [1], [0, 0, 0, 1, 1, 1], [0], [0]>} : vector<2x8x8xf32>, vector<2x8x8xf32>, vector<2x8x8xf32> -> vector<2x8x8xf32>
    "tpu.trace_stop"() : () -> ()
    %cst_109 = arith.constant 0.353553385 : f32
    %258 = vector.broadcast %cst_109 : f32 to vector<2x8x8xf32>
    %259 = arith.mulf %257, %258 : vector<2x8x8xf32>
    %260 = arith.addf %259, %8 : vector<2x8x8xf32>
    %cst_110 = arith.constant dense<0xFF800000> : vector<2x8xf32>
    %261 = vector.multi_reduction <maximumf>, %260, %cst_110 [2] : vector<2x8x8xf32> to vector<2x8xf32>
    %262 = vector.shape_cast %261 : vector<2x8xf32> to vector<2x8x1xf32>
    %263 = vector.broadcast %262 : vector<2x8x1xf32> to vector<2x8x8xf32>
    %264 = arith.subf %260, %263 : vector<2x8x8xf32>
    %265 = math.exp %264 : vector<2x8x8xf32>
    %cst_111 = arith.constant dense<0.000000e+00> : vector<2x8xf32>
    %266 = vector.multi_reduction <add>, %265, %cst_111 [2] : vector<2x8x8xf32> to vector<2x8xf32>
    %267 = vector.shape_cast %266 : vector<2x8xf32> to vector<2x8x1xf32>
    %268 = tpu.reciprocal %267 {approx = true} : vector<2x8x1xf32> -> vector<2x8x1xf32>
    %269 = vector.broadcast %268 : vector<2x8x1xf32> to vector<2x8x8xf32>
    %270 = arith.mulf %265, %269 : vector<2x8x8xf32>
    %271 = vector.extract_strided_slice %230 {offsets = [0, 0, 8], sizes = [2, 8, 8], strides = [1, 1, 1]} : vector<2x8x32xf32> to vector<2x8x8xf32>
    "tpu.trace_start"() <{level = 10 : i32, message = "bqk,bkd->bqd"}> : () -> ()
    %cst_112 = arith.constant dense<0.000000e+00> : vector<2x8x8xf32>
    %272 = tpu.matmul %270, %271, %cst_112 {dimension_numbers = #tpu.dot_dimension_numbers<[2], [1], [1], [2], [0, 0, 0, 1, 1, 2], [0], [0]>} : vector<2x8x8xf32>, vector<2x8x8xf32>, vector<2x8x8xf32> -> vector<2x8x8xf32>
    "tpu.trace_stop"() : () -> ()
    %273 = vector.shape_cast %272 : vector<2x8x8xf32> to vector<16x8xf32>
    %c1_113 = arith.constant 1 : index
    %c1_114 = arith.constant 1 : index
    %c0_115 = arith.constant 0 : index
    %c0_116 = arith.constant 0 : index
    %274 = vector.load %arg3[%c1_113, %c1_114, %c0_115, %c0_116] : memref<2x4x8x32xf32, #tpu.memory_space<vmem>>, vector<1x1x8x32xf32>
    %275 = vector.shape_cast %274 : vector<1x1x8x32xf32> to vector<8x32xf32>
    %cst_117 = arith.constant dense<0.000000e+00> : vector<16x32xf32>
    %276 = tpu.matmul %273, %275, %cst_117 {dimension_numbers = #tpu.dot_dimension_numbers<[1], [0], [0], [1], [0, 0, 1, 1], [], []>} : vector<16x8xf32>, vector<8x32xf32>, vector<16x32xf32> -> vector<16x32xf32>
    %277 = arith.addf %254, %276 : vector<16x32xf32>
    %278 = vector.extract_strided_slice %226 {offsets = [0, 0, 16], sizes = [2, 8, 8], strides = [1, 1, 1]} : vector<2x8x32xf32> to vector<2x8x8xf32>
    %279 = vector.extract_strided_slice %228 {offsets = [0, 0, 16], sizes = [2, 8, 8], strides = [1, 1, 1]} : vector<2x8x32xf32> to vector<2x8x8xf32>
    "tpu.trace_start"() <{level = 10 : i32, message = "bqd,bkd->bqk"}> : () -> ()
    %cst_118 = arith.constant dense<0.000000e+00> : vector<2x8x8xf32>
    %280 = tpu.matmul %278, %279, %cst_118 {dimension_numbers = #tpu.dot_dimension_numbers<[2], [2], [1], [1], [0, 0, 0, 1, 1, 1], [0], [0]>} : vector<2x8x8xf32>, vector<2x8x8xf32>, vector<2x8x8xf32> -> vector<2x8x8xf32>
    "tpu.trace_stop"() : () -> ()
    %cst_119 = arith.constant 0.353553385 : f32
    %281 = vector.broadcast %cst_119 : f32 to vector<2x8x8xf32>
    %282 = arith.mulf %280, %281 : vector<2x8x8xf32>
    %283 = arith.addf %282, %8 : vector<2x8x8xf32>
    %cst_120 = arith.constant dense<0xFF800000> : vector<2x8xf32>
    %284 = vector.multi_reduction <maximumf>, %283, %cst_120 [2] : vector<2x8x8xf32> to vector<2x8xf32>
    %285 = vector.shape_cast %284 : vector<2x8xf32> to vector<2x8x1xf32>
    %286 = vector.broadcast %285 : vector<2x8x1xf32> to vector<2x8x8xf32>
    %287 = arith.subf %283, %286 : vector<2x8x8xf32>
    %288 = math.exp %287 : vector<2x8x8xf32>
    %cst_121 = arith.constant dense<0.000000e+00> : vector<2x8xf32>
    %289 = vector.multi_reduction <add>, %288, %cst_121 [2] : vector<2x8x8xf32> to vector<2x8xf32>
    %290 = vector.shape_cast %289 : vector<2x8xf32> to vector<2x8x1xf32>
    %291 = tpu.reciprocal %290 {approx = true} : vector<2x8x1xf32> -> vector<2x8x1xf32>
    %292 = vector.broadcast %291 : vector<2x8x1xf32> to vector<2x8x8xf32>
    %293 = arith.mulf %288, %292 : vector<2x8x8xf32>
    %294 = vector.extract_strided_slice %230 {offsets = [0, 0, 16], sizes = [2, 8, 8], strides = [1, 1, 1]} : vector<2x8x32xf32> to vector<2x8x8xf32>
    "tpu.trace_start"() <{level = 10 : i32, message = "bqk,bkd->bqd"}> : () -> ()
    %cst_122 = arith.constant dense<0.000000e+00> : vector<2x8x8xf32>
    %295 = tpu.matmul %293, %294, %cst_122 {dimension_numbers = #tpu.dot_dimension_numbers<[2], [1], [1], [2], [0, 0, 0, 1, 1, 2], [0], [0]>} : vector<2x8x8xf32>, vector<2x8x8xf32>, vector<2x8x8xf32> -> vector<2x8x8xf32>
    "tpu.trace_stop"() : () -> ()
    %296 = vector.shape_cast %295 : vector<2x8x8xf32> to vector<16x8xf32>
    %c1_123 = arith.constant 1 : index
    %c2_124 = arith.constant 2 : index
    %c0_125 = arith.constant 0 : index
    %c0_126 = arith.constant 0 : index
    %297 = vector.load %arg3[%c1_123, %c2_124, %c0_125, %c0_126] : memref<2x4x8x32xf32, #tpu.memory_space<vmem>>, vector<1x1x8x32xf32>
    %298 = vector.shape_cast %297 : vector<1x1x8x32xf32> to vector<8x32xf32>
    %cst_127 = arith.constant dense<0.000000e+00> : vector<16x32xf32>
    %299 = tpu.matmul %296, %298, %cst_127 {dimension_numbers = #tpu.dot_dimension_numbers<[1], [0], [0], [1], [0, 0, 1, 1], [], []>} : vector<16x8xf32>, vector<8x32xf32>, vector<16x32xf32> -> vector<16x32xf32>
    %300 = arith.addf %277, %299 : vector<16x32xf32>
    %301 = vector.extract_strided_slice %226 {offsets = [0, 0, 24], sizes = [2, 8, 8], strides = [1, 1, 1]} : vector<2x8x32xf32> to vector<2x8x8xf32>
    %302 = vector.extract_strided_slice %228 {offsets = [0, 0, 24], sizes = [2, 8, 8], strides = [1, 1, 1]} : vector<2x8x32xf32> to vector<2x8x8xf32>
    "tpu.trace_start"() <{level = 10 : i32, message = "bqd,bkd->bqk"}> : () -> ()
    %cst_128 = arith.constant dense<0.000000e+00> : vector<2x8x8xf32>
    %303 = tpu.matmul %301, %302, %cst_128 {dimension_numbers = #tpu.dot_dimension_numbers<[2], [2], [1], [1], [0, 0, 0, 1, 1, 1], [0], [0]>} : vector<2x8x8xf32>, vector<2x8x8xf32>, vector<2x8x8xf32> -> vector<2x8x8xf32>
    "tpu.trace_stop"() : () -> ()
    %cst_129 = arith.constant 0.353553385 : f32
    %304 = vector.broadcast %cst_129 : f32 to vector<2x8x8xf32>
    %305 = arith.mulf %303, %304 : vector<2x8x8xf32>
    %306 = arith.addf %305, %8 : vector<2x8x8xf32>
    %cst_130 = arith.constant dense<0xFF800000> : vector<2x8xf32>
    %307 = vector.multi_reduction <maximumf>, %306, %cst_130 [2] : vector<2x8x8xf32> to vector<2x8xf32>
    %308 = vector.shape_cast %307 : vector<2x8xf32> to vector<2x8x1xf32>
    %309 = vector.broadcast %308 : vector<2x8x1xf32> to vector<2x8x8xf32>
    %310 = arith.subf %306, %309 : vector<2x8x8xf32>
    %311 = math.exp %310 : vector<2x8x8xf32>
    %cst_131 = arith.constant dense<0.000000e+00> : vector<2x8xf32>
    %312 = vector.multi_reduction <add>, %311, %cst_131 [2] : vector<2x8x8xf32> to vector<2x8xf32>
    %313 = vector.shape_cast %312 : vector<2x8xf32> to vector<2x8x1xf32>
    %314 = tpu.reciprocal %313 {approx = true} : vector<2x8x1xf32> -> vector<2x8x1xf32>
    %315 = vector.broadcast %314 : vector<2x8x1xf32> to vector<2x8x8xf32>
    %316 = arith.mulf %311, %315 : vector<2x8x8xf32>
    %317 = vector.extract_strided_slice %230 {offsets = [0, 0, 24], sizes = [2, 8, 8], strides = [1, 1, 1]} : vector<2x8x32xf32> to vector<2x8x8xf32>
    "tpu.trace_start"() <{level = 10 : i32, message = "bqk,bkd->bqd"}> : () -> ()
    %cst_132 = arith.constant dense<0.000000e+00> : vector<2x8x8xf32>
    %318 = tpu.matmul %316, %317, %cst_132 {dimension_numbers = #tpu.dot_dimension_numbers<[2], [1], [1], [2], [0, 0, 0, 1, 1, 2], [0], [0]>} : vector<2x8x8xf32>, vector<2x8x8xf32>, vector<2x8x8xf32> -> vector<2x8x8xf32>
    "tpu.trace_stop"() : () -> ()
    %319 = vector.shape_cast %318 : vector<2x8x8xf32> to vector<16x8xf32>
    %c1_133 = arith.constant 1 : index
    %c3_134 = arith.constant 3 : index
    %c0_135 = arith.constant 0 : index
    %c0_136 = arith.constant 0 : index
    %320 = vector.load %arg3[%c1_133, %c3_134, %c0_135, %c0_136] : memref<2x4x8x32xf32, #tpu.memory_space<vmem>>, vector<1x1x8x32xf32>
    %321 = vector.shape_cast %320 : vector<1x1x8x32xf32> to vector<8x32xf32>
    %cst_137 = arith.constant dense<0.000000e+00> : vector<16x32xf32>
    %322 = tpu.matmul %319, %321, %cst_137 {dimension_numbers = #tpu.dot_dimension_numbers<[1], [0], [0], [1], [0, 0, 1, 1], [], []>} : vector<16x8xf32>, vector<8x32xf32>, vector<16x32xf32> -> vector<16x32xf32>
    %323 = arith.addf %300, %322 : vector<16x32xf32>
    %324 = arith.addf %188, %323 : vector<16x32xf32>
    %325 = vector.extract_strided_slice %192 {offsets = [0, 0], sizes = [1, 32], strides = [1, 1]} : vector<2x32xf32> to vector<1x32xf32>
    %326 = vector.broadcast %325 : vector<1x32xf32> to vector<16x32xf32>
    %327 = arith.addf %324, %326 : vector<16x32xf32>
    %328 = vector.extract_strided_slice %190 {offsets = [2, 0], sizes = [1, 32], strides = [1, 1]} : vector<4x32xf32> to vector<1x32xf32>
    %329 = vector.extract_strided_slice %190 {offsets = [3, 0], sizes = [1, 32], strides = [1, 1]} : vector<4x32xf32> to vector<1x32xf32>
    %cst_138 = arith.constant dense<0.000000e+00> : vector<16xf32>
    %330 = vector.multi_reduction <add>, %327, %cst_138 [1] : vector<16x32xf32> to vector<16xf32>
    %331 = vector.shape_cast %330 : vector<16xf32> to vector<16x1xf32>
    %cst_139 = arith.constant 3.200000e+01 : f32
    %332 = vector.broadcast %cst_139 : f32 to vector<16x1xf32>
    %333 = arith.divf %331, %332 : vector<16x1xf32>
    %334 = vector.broadcast %333 : vector<16x1xf32> to vector<16x32xf32>
    %335 = arith.subf %327, %334 : vector<16x32xf32>
    %336 = arith.mulf %335, %335 : vector<16x32xf32>
    %cst_140 = arith.constant dense<0.000000e+00> : vector<16xf32>
    %337 = vector.multi_reduction <add>, %336, %cst_140 [1] : vector<16x32xf32> to vector<16xf32>
    %338 = vector.shape_cast %337 : vector<16xf32> to vector<16x1xf32>
    %cst_141 = arith.constant 3.100000e+01 : f32
    %339 = vector.broadcast %cst_141 : f32 to vector<16x1xf32>
    %340 = arith.divf %338, %339 : vector<16x1xf32>
    %341 = math.sqrt %340 : vector<16x1xf32>
    %342 = vector.broadcast %333 : vector<16x1xf32> to vector<16x32xf32>
    %343 = arith.subf %327, %342 : vector<16x32xf32>
    %344 = vector.broadcast %328 : vector<1x32xf32> to vector<16x32xf32>
    %345 = arith.mulf %344, %343 : vector<16x32xf32>
    %cst_142 = arith.constant 9.99999997E-7 : f32
    %346 = vector.broadcast %cst_142 : f32 to vector<16x1xf32>
    %347 = arith.addf %341, %346 : vector<16x1xf32>
    %348 = tpu.reciprocal %347 {approx = true} : vector<16x1xf32> -> vector<16x1xf32>
    %349 = vector.broadcast %348 : vector<16x1xf32> to vector<16x32xf32>
    %350 = arith.mulf %345, %349 : vector<16x32xf32>
    %351 = vector.broadcast %329 : vector<1x32xf32> to vector<16x32xf32>
    %352 = arith.addf %350, %351 : vector<16x32xf32>
    %c1_143 = arith.constant 1 : index
    %c0_144 = arith.constant 0 : index
    %c0_145 = arith.constant 0 : index
    %353 = vector.load %arg4[%c1_143, %c0_144, %c0_145] : memref<2x32x64xf32, #tpu.memory_space<vmem>>, vector<1x32x64xf32>
    %354 = vector.shape_cast %353 : vector<1x32x64xf32> to vector<32x64xf32>
    %cst_146 = arith.constant dense<0.000000e+00> : vector<16x64xf32>
    %355 = tpu.matmul %352, %354, %cst_146 {dimension_numbers = #tpu.dot_dimension_numbers<[1], [0], [0], [1], [0, 0, 1, 1], [], []>} : vector<16x32xf32>, vector<32x64xf32>, vector<16x64xf32> -> vector<16x64xf32>
    %c1_147 = arith.constant 1 : index
    %c0_148 = arith.constant 0 : index
    %c0_149 = arith.constant 0 : index
    %356 = vector.load %arg9[%c1_147, %c0_148, %c0_149] : memref<2x1x64xf32, #tpu.memory_space<vmem>>, vector<1x1x64xf32>
    %357 = vector.shape_cast %356 : vector<1x1x64xf32> to vector<1x64xf32>
    %358 = vector.broadcast %357 : vector<1x64xf32> to vector<16x64xf32>
    %359 = arith.addf %355, %358 : vector<16x64xf32>
    %cst_150 = arith.constant 0.000000e+00 : f32
    %360 = vector.broadcast %cst_150 : f32 to vector<16x64xf32>
    %361 = arith.maximumf %359, %360 : vector<16x64xf32>
    %c1_151 = arith.constant 1 : index
    %c0_152 = arith.constant 0 : index
    %c0_153 = arith.constant 0 : index
    %362 = vector.load %arg5[%c1_151, %c0_152, %c0_153] : memref<2x64x32xf32, #tpu.memory_space<vmem>>, vector<1x64x32xf32>
    %363 = vector.shape_cast %362 : vector<1x64x32xf32> to vector<64x32xf32>
    %cst_154 = arith.constant dense<0.000000e+00> : vector<16x32xf32>
    %364 = tpu.matmul %361, %363, %cst_154 {dimension_numbers = #tpu.dot_dimension_numbers<[1], [0], [0], [1], [0, 0, 1, 1], [], []>} : vector<16x64xf32>, vector<64x32xf32>, vector<16x32xf32> -> vector<16x32xf32>
    %365 = arith.addf %327, %364 : vector<16x32xf32>
    %366 = vector.extract_strided_slice %192 {offsets = [1, 0], sizes = [1, 32], strides = [1, 1]} : vector<2x32xf32> to vector<1x32xf32>
    %367 = vector.broadcast %366 : vector<1x32xf32> to vector<16x32xf32>
    %368 = arith.addf %365, %367 : vector<16x32xf32>
    %c0_155 = arith.constant 0 : index
    %c0_156 = arith.constant 0 : index
    %369 = vector.load %arg10[%c0_155, %c0_156] : memref<2x32xf32, #tpu.memory_space<vmem>>, vector<1x32xf32>
    %c1_157 = arith.constant 1 : index
    %c0_158 = arith.constant 0 : index
    %370 = vector.load %arg10[%c1_157, %c0_158] : memref<2x32xf32, #tpu.memory_space<vmem>>, vector<1x32xf32>
    %cst_159 = arith.constant dense<0.000000e+00> : vector<16xf32>
    %371 = vector.multi_reduction <add>, %368, %cst_159 [1] : vector<16x32xf32> to vector<16xf32>
    %372 = vector.shape_cast %371 : vector<16xf32> to vector<16x1xf32>
    %cst_160 = arith.constant 3.200000e+01 : f32
    %373 = vector.broadcast %cst_160 : f32 to vector<16x1xf32>
    %374 = arith.divf %372, %373 : vector<16x1xf32>
    %375 = vector.broadcast %374 : vector<16x1xf32> to vector<16x32xf32>
    %376 = arith.subf %368, %375 : vector<16x32xf32>
    %377 = arith.mulf %376, %376 : vector<16x32xf32>
    %cst_161 = arith.constant dense<0.000000e+00> : vector<16xf32>
    %378 = vector.multi_reduction <add>, %377, %cst_161 [1] : vector<16x32xf32> to vector<16xf32>
    %379 = vector.shape_cast %378 : vector<16xf32> to vector<16x1xf32>
    %cst_162 = arith.constant 3.100000e+01 : f32
    %380 = vector.broadcast %cst_162 : f32 to vector<16x1xf32>
    %381 = arith.divf %379, %380 : vector<16x1xf32>
    %382 = math.sqrt %381 : vector<16x1xf32>
    %383 = vector.broadcast %374 : vector<16x1xf32> to vector<16x32xf32>
    %384 = arith.subf %368, %383 : vector<16x32xf32>
    %385 = vector.broadcast %369 : vector<1x32xf32> to vector<16x32xf32>
    %386 = arith.mulf %385, %384 : vector<16x32xf32>
    %cst_163 = arith.constant 9.99999997E-7 : f32
    %387 = vector.broadcast %cst_163 : f32 to vector<16x1xf32>
    %388 = arith.addf %382, %387 : vector<16x1xf32>
    %389 = tpu.reciprocal %388 {approx = true} : vector<16x1xf32> -> vector<16x1xf32>
    %390 = vector.broadcast %389 : vector<16x1xf32> to vector<16x32xf32>
    %391 = arith.mulf %386, %390 : vector<16x32xf32>
    %392 = vector.broadcast %370 : vector<1x32xf32> to vector<16x32xf32>
    %393 = arith.addf %391, %392 : vector<16x32xf32>
    %394 = vector.shape_cast %393 : vector<16x32xf32> to vector<2x8x32xf32>
    %c0_164 = arith.constant 0 : index
    %c0_165 = arith.constant 0 : index
    %c0_166 = arith.constant 0 : index
    %395 = vector.load %arg11[%c0_164, %c0_165, %c0_166] : memref<2x8x32xf32, #tpu.memory_space<vmem>>, vector<2x8x32xf32>
    tpu.vector_store %arg11[%c0_164, %c0_165, %c0_166], %394 {strides = array<i32>} : memref<2x8x32xf32, #tpu.memory_space<vmem>>, vector<2x8x32xf32>,
    return
  }
}

</mosaic_0001>

<llo_original>
// kernel: encoder_forward.1
$region0: #{encoder_forward.1}
  #allocation0 [shape = 'u32[]', space=smem, size = 0x4, offset = 0x4, fixed_abs, tag = 'smem constant byte address 0x4 - core index']
  #allocation1 [shape = 'u32[72,128]{1,0:T(1,128)}', space=vmem, size = 0x9000, scoped, tag = 'internal scratch']
  %s0 = inlined_call_operand.hbm [shape: f32[2,8,32], index: 0, kind: input, shape index: {}]
  %s1 = inlined_call_operand.hbm [shape: f32[2,1,8], index: 1, kind: input, shape index: {}]
  %s2 = inlined_call_operand.vmem [shape: f32[2,32,96], index: 2, kind: input, shape index: {}]
  %s3 = inlined_call_operand.vmem [shape: f32[2,4,8,32], index: 3, kind: input, shape index: {}]
  %s4 = inlined_call_operand.vmem [shape: f32[2,32,64], index: 4, kind: input, shape index: {}]
  %s5 = inlined_call_operand.vmem [shape: f32[2,64,32], index: 5, kind: input, shape index: {}]
  %s6 = inlined_call_operand.hbm [shape: f32[2,4,32], index: 6, kind: input, shape index: {}]
  %s7 = inlined_call_operand.hbm [shape: f32[2,1,96], index: 7, kind: input, shape index: {}]
  %s8 = inlined_call_operand.vmem [shape: f32[2,2,32], index: 8, kind: input, shape index: {}]
  %s9 = inlined_call_operand.vmem [shape: f32[2,1,64], index: 9, kind: input, shape index: {}]
  %s10 = inlined_call_operand.vmem [shape: f32[2,32], index: 10, kind: input, shape index: {}]
  %s11 = inlined_call_operand.hbm [shape: f32[2,8,32], index: 11, kind: output, shape index: {}]
  %s12 = sld [smem:[#allocation0]]
  $region70: #{encoder_forward.1} parent=0
    _
  %s14 = ssub.s32 1, %s12
  %s15 = scalar_select 0, %s14, %s12
  $region1: #{encoder_forward.1} parent=0
    #allocation2 [shape = 'u8[8192]{0}', space=vmem, size = 0x2000, scoped, tag = 'input window, operand 0, single buffered']
    #allocation3 [shape = 's32[1]{0}', space=sflag, size = 0x4, scoped, tag = 'scoped memory for encoder_forward.1']
    #allocation4 [shape = 's32[1]{0}', space=sflag, size = 0x4, scoped, tag = 'scoped memory for encoder_forward.1']
    #allocation5 [shape = 'u8[1024]{0}', space=vmem, size = 0x400, scoped, tag = 'input window, operand 1, single buffered']
    #allocation6 [shape = 's32[1]{0}', space=sflag, size = 0x4, scoped, tag = 'scoped memory for encoder_forward.1']
    #allocation7 [shape = 'u8[4096]{0}', space=vmem, size = 0x1000, scoped, tag = 'input window, operand 6, single buffered']
    #allocation8 [shape = 'u8[1024]{0}', space=vmem, size = 0x400, scoped, tag = 'input window, operand 7, single buffered']
    #allocation9 [shape = 's32[1]{0}', space=sflag, size = 0x4, scoped, tag = 'scoped memory for encoder_forward.1']
    #allocation10 [shape = 'u8[8192]{0}', space=vmem, size = 0x2000, scoped, tag = 'output window, operand 0, single buffered']
    %16 = vsyncpa [#allocation3], 0
    %17 = vsyncpa [#allocation6], 0
    %18 = vsyncpa [#allocation9], 0
    %19 = vsyncpa [#allocation4], 0
    // Predicated region
    $region2: #{encoder_forward.1} parent=1 // pred_check
      _
    $region3: #{encoder_forward.1} parent=1 // pred_check_branch
      %21 = sbr.rel (0) target = $region5
    $region4: #{encoder_forward.1} parent=1 // pred_region
      %23 = vsyncadd [#allocation3], 0
      %s24 = sshll.u32 %s0, 4
      %s25 = int_to_ptr.hbm [resolvable:$true] %s24
      %s26 = sshll.u32 [#allocation2], 4
      %s27 = int_to_ptr.vmem [resolvable:$true] %s26
      %32 = dma.hbm_to_vmem [thread:$0]  %s25, 256, %s27, [#allocation3], 128, 128, 8
    $region5: #{encoder_forward.1} parent=1 // pred_fallthru
      _
    // Predicated region
    $region6: #{encoder_forward.1} parent=1 // pred_check
      _
    $region7: #{encoder_forward.1} parent=1 // pred_check_branch
      %34 = sbr.rel (0) target = $region9
    $region8: #{encoder_forward.1} parent=1 // pred_region
      %36 = vsyncadd [#allocation6], 0
      %s37 = sshll.u32 %s1, 4
      %s38 = int_to_ptr.hbm [resolvable:$true] %s37
      %s39 = sshll.u32 [#allocation5], 4
      %s40 = int_to_ptr.vmem [resolvable:$true] %s39
      %45 = dma.hbm_to_vmem [thread:$0]  %s38, 32, %s40, [#allocation6], 16, 16, 1
    $region9: #{encoder_forward.1} parent=1 // pred_fallthru
      _
    // Predicated region
    $region10: #{encoder_forward.1} parent=1 // pred_check
      _
    $region11: #{encoder_forward.1} parent=1 // pred_check_branch
      %47 = sbr.rel (0) target = $region13
    $region12: #{encoder_forward.1} parent=1 // pred_region
      _
    $region13: #{encoder_forward.1} parent=1 // pred_fallthru
      _
    // Predicated region
    $region14: #{encoder_forward.1} parent=1 // pred_check
      _
    $region15: #{encoder_forward.1} parent=1 // pred_check_branch
      %49 = sbr.rel (0) target = $region17
    $region16: #{encoder_forward.1} parent=1 // pred_region
      _
    $region17: #{encoder_forward.1} parent=1 // pred_fallthru
      _
    // Predicated region
    $region18: #{encoder_forward.1} parent=1 // pred_check
      _
    $region19: #{encoder_forward.1} parent=1 // pred_check_branch
      %51 = sbr.rel (0) target = $region21
    $region20: #{encoder_forward.1} parent=1 // pred_region
      _
    $region21: #{encoder_forward.1} parent=1 // pred_fallthru
      _
    // Predicated region
    $region22: #{encoder_forward.1} parent=1 // pred_check
      _
    $region23: #{encoder_forward.1} parent=1 // pred_check_branch
      %53 = sbr.rel (0) target = $region25
    $region24: #{encoder_forward.1} parent=1 // pred_region
      _
    $region25: #{encoder_forward.1} parent=1 // pred_fallthru
      _
    // Predicated region
    $region26: #{encoder_forward.1} parent=1 // pred_check
      _
    $region27: #{encoder_forward.1} parent=1 // pred_check_branch
      %55 = sbr.rel (0) target = $region29
    $region28: #{encoder_forward.1} parent=1 // pred_region
      %57 = vsyncadd [#allocation6], 0
      %s58 = sshll.u32 %s6, 4
      %s59 = int_to_ptr.hbm [resolvable:$true] %s58
      %s60 = sshll.u32 [#allocation7], 4
      %s61 = int_to_ptr.vmem [resolvable:$true] %s60
      %66 = dma.hbm_to_vmem [thread:$0]  %s59, 128, %s61, [#allocation6], 64, 64, 4
    $region29: #{encoder_forward.1} parent=1 // pred_fallthru
      _
    // Predicated region
    $region30: #{encoder_forward.1} parent=1 // pred_check
      _
    $region31: #{encoder_forward.1} parent=1 // pred_check_branch
      %68 = sbr.rel (0) target = $region33
    $region32: #{encoder_forward.1} parent=1 // pred_region
      %70 = vsyncadd [#allocation9], 0
      %s71 = sshll.u32 %s7, 4
      %s72 = int_to_ptr.hbm [resolvable:$true] %s71
      %s73 = sshll.u32 [#allocation8], 4
      %s74 = int_to_ptr.vmem [resolvable:$true] %s73
      %79 = dma.hbm_to_vmem [thread:$0]  %s72, 32, %s74, [#allocation9], 16, 16, 1
    $region33: #{encoder_forward.1} parent=1 // pred_fallthru
      _
    // Predicated region
    $region34: #{encoder_forward.1} parent=1 // pred_check
      _
    $region35: #{encoder_forward.1} parent=1 // pred_check_branch
      %81 = sbr.rel (0) target = $region37
    $region36: #{encoder_forward.1} parent=1 // pred_region
      _
    $region37: #{encoder_forward.1} parent=1 // pred_fallthru
      _
    // Predicated region
    $region38: #{encoder_forward.1} parent=1 // pred_check
      _
    $region39: #{encoder_forward.1} parent=1 // pred_check_branch
      %83 = sbr.rel (0) target = $region41
    $region40: #{encoder_forward.1} parent=1 // pred_region
      _
    $region41: #{encoder_forward.1} parent=1 // pred_fallthru
      _
    // Predicated region
    $region42: #{encoder_forward.1} parent=1 // pred_check
      _
    $region43: #{encoder_forward.1} parent=1 // pred_check_branch
      %85 = sbr.rel (0) target = $region45
    $region44: #{encoder_forward.1} parent=1 // pred_region
      _
    $region45: #{encoder_forward.1} parent=1 // pred_fallthru
      _
    // Predicated region
    $region46: #{encoder_forward.1} parent=1 // pred_check
      _
    $region47: #{encoder_forward.1} parent=1 // pred_check_branch
      %87 = sbr.rel (0) target = $region49
    $region48: #{encoder_forward.1} parent=1 // pred_region
      %89 = dma.done [#allocation3], 256
    $region49: #{encoder_forward.1} parent=1 // pred_fallthru
      _
    // Predicated region
    $region50: #{encoder_forward.1} parent=1 // pred_check
      _
    $region51: #{encoder_forward.1} parent=1 // pred_check_branch
      %91 = sbr.rel (0) target = $region53
    $region52: #{encoder_forward.1} parent=1 // pred_region
      %93 = dma.done [#allocation6], 32
    $region53: #{encoder_forward.1} parent=1 // pred_fallthru
      _
    // Predicated region
    $region54: #{encoder_forward.1} parent=1 // pred_check
      _
    $region55: #{encoder_forward.1} parent=1 // pred_check_branch
      %95 = sbr.rel (0) target = $region57
    $region56: #{encoder_forward.1} parent=1 // pred_region
      %97 = dma.done [#allocation6], 128
    $region57: #{encoder_forward.1} parent=1 // pred_fallthru
      _
    // Predicated region
    $region58: #{encoder_forward.1} parent=1 // pred_check
      _
    $region59: #{encoder_forward.1} parent=1 // pred_check_branch
      %99 = sbr.rel (0) target = $region61
    $region60: #{encoder_forward.1} parent=1 // pred_region
      %101 = dma.done [#allocation9], 32
    $region61: #{encoder_forward.1} parent=1 // pred_fallthru
      _
    %v102 = vld [vmem:[#allocation2] sm:$0xff]
    %v103 = vld [vmem:[#allocation2 + $0x8] sm:$0xff]
    %v104 = vld [vmem:[#allocation5] sm:$0x1]
    %v105 = vld [vmem:[#allocation5 + $0x1] sm:$0x1]
    %v106 = vsub.f32 %v104, 1.0
    %v107 = vsub.f32 %v105, 1.0
    %v108 = vmul.f32 %v106, 1e+09
    %v109 = vmul.f32 %v107, 1e+09
    %v112 = vperm.slane %v108, 0
    %v113 = vperm.slane %v109, 0
    %v116 = vld [vmem:[#allocation7] sm:$0xf]
    %v117 = vld [vmem:[%s8] sm:$0x3]
    %vm118 = vcmask 261120
    %v119 = vsel %vm118, %v102, 0.0
    %120 = vadd.xlane.f32.xlu0 %v119
    %v121 = vpop.xlane.xlu0 %120
    %v122 = vsel %vm118, %v103, 0.0
    %123 = vadd.xlane.f32.xlu0 %v122
    %v124 = vpop.xlane.xlu0 %123
    %v125 = vrcp.pop 32.0
    %v126 = vmul.f32 32.0, %v125
    %v127 = vsub.f32 1.0, %v126
    %v128 = vmul.f32 %v125, %v127
    %v129 = vadd.f32 %v125, %v128
    %vm130 = vweird.f32 %v125
    %v131 = vsel %vm130, %v125, %v129
    %v132 = vmul.f32 %v121, %v131
    %v133 = vmul.f32 %v124, %v131
    %v134 = vsub.f32 %v102, %v132
    %v135 = vsub.f32 %v103, %v133
    %v136 = vmul.f32 %v134, %v134
    %v137 = vmul.f32 %v135, %v135
    %v138 = vsel %vm118, %v136, 0.0
    %139 = vadd.xlane.f32.xlu0 %v138
    %v140 = vpop.xlane.xlu0 %139
    %v141 = vsel %vm118, %v137, 0.0
    %142 = vadd.xlane.f32.xlu0 %v141
    %v143 = vpop.xlane.xlu0 %142
    %v144 = vrcp.pop 31.0
    %v145 = vmul.f32 31.0, %v144
    %v146 = vsub.f32 1.0, %v145
    %v147 = vmul.f32 %v144, %v146
    %v148 = vadd.f32 %v144, %v147
    %vm149 = vweird.f32 %v144
    %v150 = vsel %vm149, %v144, %v148
    %v151 = vmul.f32 %v140, %v150
    %v152 = vmul.f32 %v143, %v150
    %v153 = vrsqrt.pop %v151
    %v154 = vmul.f32 %v153, %v151
    %v155 = vmul.f32 %v154, %v153
    %v156 = vmul.f32 0.5, %v155
    %v157 = vsub.f32 1.5, %v156
    %v158 = vmul.f32 %v153, %v157
    %v159 = vmul.f32 %v151, %v158
    %vm160 = vcmp.eq.f32.partialorder %v151, inf
    %v161 = vsel %vm160, %v151, %v159
    %vm162 = vcmp.eq.f32.partialorder %v151, 0.0
    %v163 = vand.u32 %v151, 2147483648
    %v164 = vsel %vm162, %v163, %v161
    %v165 = vrsqrt.pop %v152
    %v166 = vmul.f32 %v165, %v152
    %v167 = vmul.f32 %v166, %v165
    %v168 = vmul.f32 0.5, %v167
    %v169 = vsub.f32 1.5, %v168
    %v170 = vmul.f32 %v165, %v169
    %v171 = vmul.f32 %v152, %v170
    %vm172 = vcmp.eq.f32.partialorder %v152, inf
    %v173 = vsel %vm172, %v152, %v171
    %vm174 = vcmp.eq.f32.partialorder %v152, 0.0
    %v175 = vand.u32 %v152, 2147483648
    %v176 = vsel %vm174, %v175, %v173
    %v177 = vperm.slane %v116, 0
    %v178 = vmul.f32 %v177, %v134
    %v179 = vmul.f32 %v177, %v135
    %v180 = vadd.f32 %v164, 1e-06
    %v181 = vadd.f32 %v176, 1e-06
    %v182 = vrcp.pop %v180
    %v183 = vrcp.pop %v181
    %v184 = vmul.f32 %v178, %v182
    %v185 = vmul.f32 %v179, %v183
    %v186 = vperm.slane %v116, 1
    %v187 = vadd.f32 %v184, %v186
    %v188 = vadd.f32 %v185, %v186
    %v189 = vld [vmem:[%s2] sm:$0xff]
    %v190 = vld [vmem:[%s2 + $0x8] sm:$0xff]
    %v191 = vld [vmem:[%s2 + $0x10] sm:$0xff]
    %v192 = vld [vmem:[%s2 + $0x18] sm:$0xff]
    %v193 = vld [vmem:[#allocation8] sm:$0x1]
    %v195 = vperm.slane %v193, 0
    %v198 = vsel %vm118, %v187, 0
    %v201 = vsel %vm118, %v188, 0
    %203 = vmatpush.msra.mxu0 0.0
    %204 = vmatpush.msra.mxu0 0.0
    %205 = vmatpush.msra.mxu0 0.0
    %206 = vmatpush.msra.mxu0 0.0
    %207 = vmatpush.msra.mxu0 0.0
    %208 = vmatpush.msra.mxu0 0.0
    %209 = vmatpush.msra.mxu0 0.0
    %210 = vmatpush.msra.mxu0 0.0
    %211 = vmatpush.msra.mxu0 0.0
    %212 = vmatpush.msra.mxu0 0.0
    %213 = vmatpush.msra.mxu0 0.0
    %214 = vmatpush.msra.mxu0 0.0
    %215 = vmatpush.msra.mxu0 %v192
    %216 = vmatpush.msra.mxu0 %v191
    %217 = vmatpush.msra.mxu0 %v190
    %218 = vmatpush.msra.mxu0 %v189
    %219 = vmatmul.f32.gmra.mxu0 %v198
    %v220 = vpop.f32.mrf.mxu0
    %v221 = vadd.f32 %v195, %v220
    %222 = vmatmul.f32.gmra.mxu0 %v201
    %v223 = vpop.f32.mrf.mxu0
    %v224 = vadd.f32 %v195, %v223
    %225 = vdwg.mxu0
    %227 = vrot.lane.b32.xlu0 %v221, 96
    %v228 = vpop.permute.xlu0 %227
    %vm229 = vcmask 64512
    %v230 = vsel %vm229, %v221, 0
    %v232 = vsel %vm229, %v228, 0
    %234 = vmatpush.xpose.msra.mxu0 0.0
    %235 = vmatpush.xpose.msra.mxu0 0.0
    %236 = vmatpush.xpose.msra.mxu0 0.0
    %237 = vmatpush.xpose.msra.mxu0 0.0
    %238 = vmatpush.xpose.msra.mxu0 0.0
    %239 = vmatpush.xpose.msra.mxu0 0.0
    %240 = vmatpush.xpose.msra.mxu0 0.0
    %241 = vmatpush.xpose.msra.mxu0 0.0
    %242 = vmatpush.xpose.msra.mxu0 0.0
    %243 = vmatpush.xpose.msra.mxu0 0.0
    %244 = vmatpush.xpose.msra.mxu0 0.0
    %245 = vmatpush.xpose.msra.mxu0 0.0
    %246 = vmatpush.xpose.msra.mxu0 0.0
    %247 = vmatpush.xpose.msra.mxu0 0.0
    %248 = vmatpush.xpose.msra.mxu0 0.0
    %249 = vmatpush.xpose.msra.mxu0 %v232
    %250 = vmatmul.f32.gmra.mxu0 %v230
    %v251 = vpop.f32.mrf.mxu0
    %v252 = vadd.f32 0.0, %v251
    %253 = vdwg.mxu0
    %255 = vrot.lane.b32.xlu0 %v224, 96
    %v256 = vpop.permute.xlu0 %255
    %v257 = vsel %vm229, %v224, 0
    %v259 = vsel %vm229, %v256, 0
    %261 = vmatpush.xpose.msra.mxu0 0.0
    %262 = vmatpush.xpose.msra.mxu0 0.0
    %263 = vmatpush.xpose.msra.mxu0 0.0
    %264 = vmatpush.xpose.msra.mxu0 0.0
    %265 = vmatpush.xpose.msra.mxu0 0.0
    %266 = vmatpush.xpose.msra.mxu0 0.0
    %267 = vmatpush.xpose.msra.mxu0 0.0
    %268 = vmatpush.xpose.msra.mxu0 0.0
    %269 = vmatpush.xpose.msra.mxu0 0.0
    %270 = vmatpush.xpose.msra.mxu0 0.0
    %271 = vmatpush.xpose.msra.mxu0 0.0
    %272 = vmatpush.xpose.msra.mxu0 0.0
    %273 = vmatpush.xpose.msra.mxu0 0.0
    %274 = vmatpush.xpose.msra.mxu0 0.0
    %275 = vmatpush.xpose.msra.mxu0 0.0
    %276 = vmatpush.xpose.msra.mxu0 %v259
    %277 = vmatmul.f32.gmra.mxu0 %v257
    %v278 = vpop.f32.mrf.mxu0
    %v279 = vadd.f32 0.0, %v278
    %280 = vdwg.mxu0
    %v281 = vmul.f32 %v252, 0.35355338
    %v282 = vmul.f32 %v279, 0.35355338
    %v283 = vadd.f32 %v281, %v112
    %v284 = vadd.f32 %v282, %v113
    %v285 = vsel %vm229, %v283, -inf
    %286 = vmax.xlane.f32.xlu0 %v285
    %v287 = vpop.xlane.xlu0 %286
    %v288 = vsel %vm229, %v284, -inf
    %289 = vmax.xlane.f32.xlu0 %v288
    %v290 = vpop.xlane.xlu0 %289
    %v291 = vsub.f32 %v283, %v287
    %v292 = vsub.f32 %v284, %v290
    %v293 = vmul.f32 %v291, 1.442695
    %v294 = vpow.pop %v293
    %v295 = vmul.f32 %v292, 1.442695
    %v296 = vpow.pop %v295
    %v297 = vsel %vm229, %v294, 0.0
    %298 = vadd.xlane.f32.xlu0 %v297
    %v299 = vpop.xlane.xlu0 %298
    %v300 = vsel %vm229, %v296, 0.0
    %301 = vadd.xlane.f32.xlu0 %v300
    %v302 = vpop.xlane.xlu0 %301
    %v303 = vrcp.pop %v299
    %v304 = vrcp.pop %v302
    %v305 = vmul.f32 %v294, %v303
    %v306 = vmul.f32 %v296, %v304
    %307 = vrot.lane.b32.xlu0 %v221, 64
    %v308 = vpop.permute.xlu0 %307
    %v311 = vsel %vm229, %v305, 0
    %313 = vmatpush.msra.mxu0 0.0
    %314 = vmatpush.msra.mxu0 0.0
    %315 = vmatpush.msra.mxu0 0.0
    %316 = vmatpush.msra.mxu0 0.0
    %317 = vmatpush.msra.mxu0 0.0
    %318 = vmatpush.msra.mxu0 0.0
    %319 = vmatpush.msra.mxu0 0.0
    %320 = vmatpush.msra.mxu0 0.0
    %321 = vmatpush.msra.mxu0 0.0
    %322 = vmatpush.msra.mxu0 0.0
    %323 = vmatpush.msra.mxu0 0.0
    %324 = vmatpush.msra.mxu0 0.0
    %325 = vmatpush.msra.mxu0 0.0
    %326 = vmatpush.msra.mxu0 0.0
    %327 = vmatpush.msra.mxu0 0.0
    %328 = vmatpush.msra.mxu0 %v308
    %329 = vmatmul.f32.gmra.mxu0 %v311
    %v330 = vpop.f32.mrf.mxu0
    %v331 = vadd.f32 0.0, %v330
    %332 = vdwg.mxu0
    %333 = vrot.lane.b32.xlu0 %v224, 64
    %v334 = vpop.permute.xlu0 %333
    %v337 = vsel %vm229, %v306, 0
    %339 = vmatpush.msra.mxu0 0.0
    %340 = vmatpush.msra.mxu0 0.0
    %341 = vmatpush.msra.mxu0 0.0
    %342 = vmatpush.msra.mxu0 0.0
    %343 = vmatpush.msra.mxu0 0.0
    %344 = vmatpush.msra.mxu0 0.0
    %345 = vmatpush.msra.mxu0 0.0
    %346 = vmatpush.msra.mxu0 0.0
    %347 = vmatpush.msra.mxu0 0.0
    %348 = vmatpush.msra.mxu0 0.0
    %349 = vmatpush.msra.mxu0 0.0
    %350 = vmatpush.msra.mxu0 0.0
    %351 = vmatpush.msra.mxu0 0.0
    %352 = vmatpush.msra.mxu0 0.0
    %353 = vmatpush.msra.mxu0 0.0
    %354 = vmatpush.msra.mxu0 %v334
    %355 = vmatmul.f32.gmra.mxu0 %v337
    %v356 = vpop.f32.mrf.mxu0
    %v357 = vadd.f32 0.0, %v356
    %358 = vdwg.mxu0
    %v359 = vld [vmem:[%s3] sm:$0xff]
    %360 = vrot.lane.b32.xlu0 %v221, 120
    %v361 = vpop.permute.xlu0 %360
    %362 = vrot.lane.b32.xlu0 %v221, 88
    %v363 = vpop.permute.xlu0 %362
    %v364 = vsel %vm229, %v361, 0
    %v366 = vsel %vm229, %v363, 0
    %368 = vmatpush.xpose.msra.mxu0 0.0
    %369 = vmatpush.xpose.msra.mxu0 0.0
    %370 = vmatpush.xpose.msra.mxu0 0.0
    %371 = vmatpush.xpose.msra.mxu0 0.0
    %372 = vmatpush.xpose.msra.mxu0 0.0
    %373 = vmatpush.xpose.msra.mxu0 0.0
    %374 = vmatpush.xpose.msra.mxu0 0.0
    %375 = vmatpush.xpose.msra.mxu0 0.0
    %376 = vmatpush.xpose.msra.mxu0 0.0
    %377 = vmatpush.xpose.msra.mxu0 0.0
    %378 = vmatpush.xpose.msra.mxu0 0.0
    %379 = vmatpush.xpose.msra.mxu0 0.0
    %380 = vmatpush.xpose.msra.mxu0 0.0
    %381 = vmatpush.xpose.msra.mxu0 0.0
    %382 = vmatpush.xpose.msra.mxu0 0.0
    %383 = vmatpush.xpose.msra.mxu0 %v366
    %384 = vmatmul.f32.gmra.mxu0 %v364
    %v385 = vpop.f32.mrf.mxu0
    %v386 = vadd.f32 0.0, %v385
    %387 = vdwg.mxu0
    %388 = vrot.lane.b32.xlu0 %v224, 120
    %v389 = vpop.permute.xlu0 %388
    %390 = vrot.lane.b32.xlu0 %v224, 88
    %v391 = vpop.permute.xlu0 %390
    %v392 = vsel %vm229, %v389, 0
    %v394 = vsel %vm229, %v391, 0
    %396 = vmatpush.xpose.msra.mxu0 0.0
    %397 = vmatpush.xpose.msra.mxu0 0.0
    %398 = vmatpush.xpose.msra.mxu0 0.0
    %399 = vmatpush.xpose.msra.mxu0 0.0
    %400 = vmatpush.xpose.msra.mxu0 0.0
    %401 = vmatpush.xpose.msra.mxu0 0.0
    %402 = vmatpush.xpose.msra.mxu0 0.0
    %403 = vmatpush.xpose.msra.mxu0 0.0
    %404 = vmatpush.xpose.msra.mxu0 0.0
    %405 = vmatpush.xpose.msra.mxu0 0.0
    %406 = vmatpush.xpose.msra.mxu0 0.0
    %407 = vmatpush.xpose.msra.mxu0 0.0
    %408 = vmatpush.xpose.msra.mxu0 0.0
    %409 = vmatpush.xpose.msra.mxu0 0.0
    %410 = vmatpush.xpose.msra.mxu0 0.0
    %411 = vmatpush.xpose.msra.mxu0 %v394
    %412 = vmatmul.f32.gmra.mxu0 %v392
    %v413 = vpop.f32.mrf.mxu0
    %v414 = vadd.f32 0.0, %v413
    %415 = vdwg.mxu0
    %v416 = vmul.f32 %v386, 0.35355338
    %v417 = vmul.f32 %v414, 0.35355338
    %v418 = vadd.f32 %v416, %v112
    %v419 = vadd.f32 %v417, %v113
    %v420 = vsel %vm229, %v418, -inf
    %421 = vmax.xlane.f32.xlu0 %v420
    %v422 = vpop.xlane.xlu0 %421
    %v423 = vsel %vm229, %v419, -inf
    %424 = vmax.xlane.f32.xlu0 %v423
    %v425 = vpop.xlane.xlu0 %424
    %v426 = vsub.f32 %v418, %v422
    %v427 = vsub.f32 %v419, %v425
    %v428 = vmul.f32 %v426, 1.442695
    %v429 = vpow.pop %v428
    %v430 = vmul.f32 %v427, 1.442695
    %v431 = vpow.pop %v430
    %v432 = vsel %vm229, %v429, 0.0
    %433 = vadd.xlane.f32.xlu0 %v432
    %v434 = vpop.xlane.xlu0 %433
    %v435 = vsel %vm229, %v431, 0.0
    %436 = vadd.xlane.f32.xlu0 %v435
    %v437 = vpop.xlane.xlu0 %436
    %v438 = vrcp.pop %v434
    %v439 = vrcp.pop %v437
    %v440 = vmul.f32 %v429, %v438
    %v441 = vmul.f32 %v431, %v439
    %442 = vrot.lane.b32.xlu0 %v221, 56
    %v443 = vpop.permute.xlu0 %442
    %v446 = vsel %vm229, %v440, 0
    %448 = vmatpush.msra.mxu0 0.0
    %449 = vmatpush.msra.mxu0 0.0
    %450 = vmatpush.msra.mxu0 0.0
    %451 = vmatpush.msra.mxu0 0.0
    %452 = vmatpush.msra.mxu0 0.0
    %453 = vmatpush.msra.mxu0 0.0
    %454 = vmatpush.msra.mxu0 0.0
    %455 = vmatpush.msra.mxu0 0.0
    %456 = vmatpush.msra.mxu0 0.0
    %457 = vmatpush.msra.mxu0 0.0
    %458 = vmatpush.msra.mxu0 0.0
    %459 = vmatpush.msra.mxu0 0.0
    %460 = vmatpush.msra.mxu0 0.0
    %461 = vmatpush.msra.mxu0 0.0
    %462 = vmatpush.msra.mxu0 0.0
    %463 = vmatpush.msra.mxu0 %v443
    %464 = vmatmul.f32.gmra.mxu0 %v446
    %v465 = vpop.f32.mrf.mxu0
    %v466 = vadd.f32 0.0, %v465
    %467 = vdwg.mxu0
    %468 = vrot.lane.b32.xlu0 %v224, 56
    %v469 = vpop.permute.xlu0 %468
    %v472 = vsel %vm229, %v441, 0
    %474 = vmatpush.msra.mxu0 0.0
    %475 = vmatpush.msra.mxu0 0.0
    %476 = vmatpush.msra.mxu0 0.0
    %477 = vmatpush.msra.mxu0 0.0
    %478 = vmatpush.msra.mxu0 0.0
    %479 = vmatpush.msra.mxu0 0.0
    %480 = vmatpush.msra.mxu0 0.0
    %481 = vmatpush.msra.mxu0 0.0
    %482 = vmatpush.msra.mxu0 0.0
    %483 = vmatpush.msra.mxu0 0.0
    %484 = vmatpush.msra.mxu0 0.0
    %485 = vmatpush.msra.mxu0 0.0
    %486 = vmatpush.msra.mxu0 0.0
    %487 = vmatpush.msra.mxu0 0.0
    %488 = vmatpush.msra.mxu0 0.0
    %489 = vmatpush.msra.mxu0 %v469
    %490 = vmatmul.f32.gmra.mxu0 %v472
    %v491 = vpop.f32.mrf.mxu0
    %v492 = vadd.f32 0.0, %v491
    %493 = vdwg.mxu0
    %s494 = scalar_lea.vmem %s3, 8
    %v495 = vld [vmem:[%s494] sm:$0xff]
    %v497 = vsel %vm229, %v466, 0
    %v500 = vsel %vm229, %v492, 0
    %502 = vmatpush.msra.mxu0 0.0
    %503 = vmatpush.msra.mxu0 0.0
    %504 = vmatpush.msra.mxu0 0.0
    %505 = vmatpush.msra.mxu0 0.0
    %506 = vmatpush.msra.mxu0 0.0
    %507 = vmatpush.msra.mxu0 0.0
    %508 = vmatpush.msra.mxu0 0.0
    %509 = vmatpush.msra.mxu0 0.0
    %510 = vmatpush.msra.mxu0 0.0
    %511 = vmatpush.msra.mxu0 0.0
    %512 = vmatpush.msra.mxu0 0.0
    %513 = vmatpush.msra.mxu0 0.0
    %514 = vmatpush.msra.mxu0 0.0
    %515 = vmatpush.msra.mxu0 0.0
    %516 = vmatpush.msra.mxu0 0.0
    %517 = vmatpush.msra.mxu0 %v495
    %518 = vmatmul.f32.gmra.mxu0 %v497
    %v519 = vpop.f32.mrf.mxu0
    %v520 = vadd.f32 0.0, %v519
    %521 = vmatmul.f32.gmra.mxu0 %v500
    %v522 = vpop.f32.mrf.mxu0
    %v523 = vadd.f32 0.0, %v522
    %524 = vdwg.mxu0
    %v526 = vsel %vm229, %v331, 0
    %v529 = vsel %vm229, %v357, 0
    %531 = vmatpush.msra.mxu0 0.0
    %532 = vmatpush.msra.mxu0 0.0
    %533 = vmatpush.msra.mxu0 0.0
    %534 = vmatpush.msra.mxu0 0.0
    %535 = vmatpush.msra.mxu0 0.0
    %536 = vmatpush.msra.mxu0 0.0
    %537 = vmatpush.msra.mxu0 0.0
    %538 = vmatpush.msra.mxu0 0.0
    %539 = vmatpush.msra.mxu0 0.0
    %540 = vmatpush.msra.mxu0 0.0
    %541 = vmatpush.msra.mxu0 0.0
    %542 = vmatpush.msra.mxu0 0.0
    %543 = vmatpush.msra.mxu0 0.0
    %544 = vmatpush.msra.mxu0 0.0
    %545 = vmatpush.msra.mxu0 0.0
    %546 = vmatpush.msra.mxu0 %v359
    %547 = vmatmul.f32.gmra.mxu0 %v526
    %v548 = vpop.f32.mrf.mxu0
    %v549 = vadd.f32 %v520, %v548
    %550 = vmatmul.f32.gmra.mxu0 %v529
    %v551 = vpop.f32.mrf.mxu0
    %v552 = vadd.f32 %v523, %v551
    %553 = vdwg.mxu0
    %554 = vrot.lane.b32.xlu0 %v221, 112
    %v555 = vpop.permute.xlu0 %554
    %556 = vrot.lane.b32.xlu0 %v221, 80
    %v557 = vpop.permute.xlu0 %556
    %v558 = vsel %vm229, %v555, 0
    %v560 = vsel %vm229, %v557, 0
    %562 = vmatpush.xpose.msra.mxu0 0.0
    %563 = vmatpush.xpose.msra.mxu0 0.0
    %564 = vmatpush.xpose.msra.mxu0 0.0
    %565 = vmatpush.xpose.msra.mxu0 0.0
    %566 = vmatpush.xpose.msra.mxu0 0.0
    %567 = vmatpush.xpose.msra.mxu0 0.0
    %568 = vmatpush.xpose.msra.mxu0 0.0
    %569 = vmatpush.xpose.msra.mxu0 0.0
    %570 = vmatpush.xpose.msra.mxu0 0.0
    %571 = vmatpush.xpose.msra.mxu0 0.0
    %572 = vmatpush.xpose.msra.mxu0 0.0
    %573 = vmatpush.xpose.msra.mxu0 0.0
    %574 = vmatpush.xpose.msra.mxu0 0.0
    %575 = vmatpush.xpose.msra.mxu0 0.0
    %576 = vmatpush.xpose.msra.mxu0 0.0
    %577 = vmatpush.xpose.msra.mxu0 %v560
    %578 = vmatmul.f32.gmra.mxu0 %v558
    %v579 = vpop.f32.mrf.mxu0
    %v580 = vadd.f32 0.0, %v579
    %581 = vdwg.mxu0
    %582 = vrot.lane.b32.xlu0 %v224, 112
    %v583 = vpop.permute.xlu0 %582
    %584 = vrot.lane.b32.xlu0 %v224, 80
    %v585 = vpop.permute.xlu0 %584
    %v586 = vsel %vm229, %v583, 0
    %v588 = vsel %vm229, %v585, 0
    %590 = vmatpush.xpose.msra.mxu0 0.0
    %591 = vmatpush.xpose.msra.mxu0 0.0
    %592 = vmatpush.xpose.msra.mxu0 0.0
    %593 = vmatpush.xpose.msra.mxu0 0.0
    %594 = vmatpush.xpose.msra.mxu0 0.0
    %595 = vmatpush.xpose.msra.mxu0 0.0
    %596 = vmatpush.xpose.msra.mxu0 0.0
    %597 = vmatpush.xpose.msra.mxu0 0.0
    %598 = vmatpush.xpose.msra.mxu0 0.0
    %599 = vmatpush.xpose.msra.mxu0 0.0
    %600 = vmatpush.xpose.msra.mxu0 0.0
    %601 = vmatpush.xpose.msra.mxu0 0.0
    %602 = vmatpush.xpose.msra.mxu0 0.0
    %603 = vmatpush.xpose.msra.mxu0 0.0
    %604 = vmatpush.xpose.msra.mxu0 0.0
    %605 = vmatpush.xpose.msra.mxu0 %v588
    %606 = vmatmul.f32.gmra.mxu0 %v586
    %v607 = vpop.f32.mrf.mxu0
    %v608 = vadd.f32 0.0, %v607
    %609 = vdwg.mxu0
    %v610 = vmul.f32 %v580, 0.35355338
    %v611 = vmul.f32 %v608, 0.35355338
    %v612 = vadd.f32 %v610, %v112
    %v613 = vadd.f32 %v611, %v113
    %v614 = vsel %vm229, %v612, -inf
    %615 = vmax.xlane.f32.xlu0 %v614
    %v616 = vpop.xlane.xlu0 %615
    %v617 = vsel %vm229, %v613, -inf
    %618 = vmax.xlane.f32.xlu0 %v617
    %v619 = vpop.xlane.xlu0 %618
    %v620 = vsub.f32 %v612, %v616
    %v621 = vsub.f32 %v613, %v619
    %v622 = vmul.f32 %v620, 1.442695
    %v623 = vpow.pop %v622
    %v624 = vmul.f32 %v621, 1.442695
    %v625 = vpow.pop %v624
    %v626 = vsel %vm229, %v623, 0.0
    %627 = vadd.xlane.f32.xlu0 %v626
    %v628 = vpop.xlane.xlu0 %627
    %v629 = vsel %vm229, %v625, 0.0
    %630 = vadd.xlane.f32.xlu0 %v629
    %v631 = vpop.xlane.xlu0 %630
    %v632 = vrcp.pop %v628
    %v633 = vrcp.pop %v631
    %v634 = vmul.f32 %v623, %v632
    %v635 = vmul.f32 %v625, %v633
    %636 = vrot.lane.b32.xlu0 %v221, 48
    %v637 = vpop.permute.xlu0 %636
    %v640 = vsel %vm229, %v634, 0
    %642 = vmatpush.msra.mxu0 0.0
    %643 = vmatpush.msra.mxu0 0.0
    %644 = vmatpush.msra.mxu0 0.0
    %645 = vmatpush.msra.mxu0 0.0
    %646 = vmatpush.msra.mxu0 0.0
    %647 = vmatpush.msra.mxu0 0.0
    %648 = vmatpush.msra.mxu0 0.0
    %649 = vmatpush.msra.mxu0 0.0
    %650 = vmatpush.msra.mxu0 0.0
    %651 = vmatpush.msra.mxu0 0.0
    %652 = vmatpush.msra.mxu0 0.0
    %653 = vmatpush.msra.mxu0 0.0
    %654 = vmatpush.msra.mxu0 0.0
    %655 = vmatpush.msra.mxu0 0.0
    %656 = vmatpush.msra.mxu0 0.0
    %657 = vmatpush.msra.mxu0 %v637
    %658 = vmatmul.f32.gmra.mxu0 %v640
    %v659 = vpop.f32.mrf.mxu0
    %v660 = vadd.f32 0.0, %v659
    %661 = vdwg.mxu0
    %662 = vrot.lane.b32.xlu0 %v224, 48
    %v663 = vpop.permute.xlu0 %662
    %v666 = vsel %vm229, %v635, 0
    %668 = vmatpush.msra.mxu0 0.0
    %669 = vmatpush.msra.mxu0 0.0
    %670 = vmatpush.msra.mxu0 0.0
    %671 = vmatpush.msra.mxu0 0.0
    %672 = vmatpush.msra.mxu0 0.0
    %673 = vmatpush.msra.mxu0 0.0
    %674 = vmatpush.msra.mxu0 0.0
    %675 = vmatpush.msra.mxu0 0.0
    %676 = vmatpush.msra.mxu0 0.0
    %677 = vmatpush.msra.mxu0 0.0
    %678 = vmatpush.msra.mxu0 0.0
    %679 = vmatpush.msra.mxu0 0.0
    %680 = vmatpush.msra.mxu0 0.0
    %681 = vmatpush.msra.mxu0 0.0
    %682 = vmatpush.msra.mxu0 0.0
    %683 = vmatpush.msra.mxu0 %v663
    %684 = vmatmul.f32.gmra.mxu0 %v666
    %v685 = vpop.f32.mrf.mxu0
    %v686 = vadd.f32 0.0, %v685
    %687 = vdwg.mxu0
    %s688 = scalar_lea.vmem %s3, 16
    %v689 = vld [vmem:[%s688] sm:$0xff]
    %v691 = vsel %vm229, %v660, 0
    %v694 = vsel %vm229, %v686, 0
    %696 = vmatpush.msra.mxu0 0.0
    %697 = vmatpush.msra.mxu0 0.0
    %698 = vmatpush.msra.mxu0 0.0
    %699 = vmatpush.msra.mxu0 0.0
    %700 = vmatpush.msra.mxu0 0.0
    %701 = vmatpush.msra.mxu0 0.0
    %702 = vmatpush.msra.mxu0 0.0
    %703 = vmatpush.msra.mxu0 0.0
    %704 = vmatpush.msra.mxu0 0.0
    %705 = vmatpush.msra.mxu0 0.0
    %706 = vmatpush.msra.mxu0 0.0
    %707 = vmatpush.msra.mxu0 0.0
    %708 = vmatpush.msra.mxu0 0.0
    %709 = vmatpush.msra.mxu0 0.0
    %710 = vmatpush.msra.mxu0 0.0
    %711 = vmatpush.msra.mxu0 %v689
    %712 = vmatmul.f32.gmra.mxu0 %v691
    %v713 = vpop.f32.mrf.mxu0
    %v714 = vadd.f32 0.0, %v713
    %715 = vmatmul.f32.gmra.mxu0 %v694
    %v716 = vpop.f32.mrf.mxu0
    %v717 = vadd.f32 0.0, %v716
    %718 = vdwg.mxu0
    %v719 = vadd.f32 %v549, %v714
    %v720 = vadd.f32 %v552, %v717
    %721 = vrot.lane.b32.xlu0 %v221, 104
    %v722 = vpop.permute.xlu0 %721
    %723 = vrot.lane.b32.xlu0 %v221, 72
    %v724 = vpop.permute.xlu0 %723
    %v725 = vsel %vm229, %v722, 0
    %v727 = vsel %vm229, %v724, 0
    %729 = vmatpush.xpose.msra.mxu0 0.0
    %730 = vmatpush.xpose.msra.mxu0 0.0
    %731 = vmatpush.xpose.msra.mxu0 0.0
    %732 = vmatpush.xpose.msra.mxu0 0.0
    %733 = vmatpush.xpose.msra.mxu0 0.0
    %734 = vmatpush.xpose.msra.mxu0 0.0
    %735 = vmatpush.xpose.msra.mxu0 0.0
    %736 = vmatpush.xpose.msra.mxu0 0.0
    %737 = vmatpush.xpose.msra.mxu0 0.0
    %738 = vmatpush.xpose.msra.mxu0 0.0
    %739 = vmatpush.xpose.msra.mxu0 0.0
    %740 = vmatpush.xpose.msra.mxu0 0.0
    %741 = vmatpush.xpose.msra.mxu0 0.0
    %742 = vmatpush.xpose.msra.mxu0 0.0
    %743 = vmatpush.xpose.msra.mxu0 0.0
    %744 = vmatpush.xpose.msra.mxu0 %v727
    %745 = vmatmul.f32.gmra.mxu0 %v725
    %v746 = vpop.f32.mrf.mxu0
    %v747 = vadd.f32 0.0, %v746
    %748 = vdwg.mxu0
    %749 = vrot.lane.b32.xlu0 %v224, 104
    %v750 = vpop.permute.xlu0 %749
    %751 = vrot.lane.b32.xlu0 %v224, 72
    %v752 = vpop.permute.xlu0 %751
    %v753 = vsel %vm229, %v750, 0
    %v755 = vsel %vm229, %v752, 0
    %757 = vmatpush.xpose.msra.mxu0 0.0
    %758 = vmatpush.xpose.msra.mxu0 0.0
    %759 = vmatpush.xpose.msra.mxu0 0.0
    %760 = vmatpush.xpose.msra.mxu0 0.0
    %761 = vmatpush.xpose.msra.mxu0 0.0
    %762 = vmatpush.xpose.msra.mxu0 0.0
    %763 = vmatpush.xpose.msra.mxu0 0.0
    %764 = vmatpush.xpose.msra.mxu0 0.0
    %765 = vmatpush.xpose.msra.mxu0 0.0
    %766 = vmatpush.xpose.msra.mxu0 0.0
    %767 = vmatpush.xpose.msra.mxu0 0.0
    %768 = vmatpush.xpose.msra.mxu0 0.0
    %769 = vmatpush.xpose.msra.mxu0 0.0
    %770 = vmatpush.xpose.msra.mxu0 0.0
    %771 = vmatpush.xpose.msra.mxu0 0.0
    %772 = vmatpush.xpose.msra.mxu0 %v755
    %773 = vmatmul.f32.gmra.mxu0 %v753
    %v774 = vpop.f32.mrf.mxu0
    %v775 = vadd.f32 0.0, %v774
    %776 = vdwg.mxu0
    %v777 = vmul.f32 %v747, 0.35355338
    %v778 = vmul.f32 %v775, 0.35355338
    %v779 = vadd.f32 %v777, %v112
    %v780 = vadd.f32 %v778, %v113
    %v781 = vsel %vm229, %v779, -inf
    %782 = vmax.xlane.f32.xlu0 %v781
    %v783 = vpop.xlane.xlu0 %782
    %v784 = vsel %vm229, %v780, -inf
    %785 = vmax.xlane.f32.xlu0 %v784
    %v786 = vpop.xlane.xlu0 %785
    %v787 = vsub.f32 %v779, %v783
    %v788 = vsub.f32 %v780, %v786
    %v789 = vmul.f32 %v787, 1.442695
    %v790 = vpow.pop %v789
    %v791 = vmul.f32 %v788, 1.442695
    %v792 = vpow.pop %v791
    %v793 = vsel %vm229, %v790, 0.0
    %794 = vadd.xlane.f32.xlu0 %v793
    %v795 = vpop.xlane.xlu0 %794
    %v796 = vsel %vm229, %v792, 0.0
    %797 = vadd.xlane.f32.xlu0 %v796
    %v798 = vpop.xlane.xlu0 %797
    %v799 = vrcp.pop %v795
    %v800 = vrcp.pop %v798
    %v801 = vmul.f32 %v790, %v799
    %v802 = vmul.f32 %v792, %v800
    %803 = vrot.lane.b32.xlu0 %v221, 40
    %v804 = vpop.permute.xlu0 %803
    %v807 = vsel %vm229, %v801, 0
    %809 = vmatpush.msra.mxu0 0.0
    %810 = vmatpush.msra.mxu0 0.0
    %811 = vmatpush.msra.mxu0 0.0
    %812 = vmatpush.msra.mxu0 0.0
    %813 = vmatpush.msra.mxu0 0.0
    %814 = vmatpush.msra.mxu0 0.0
    %815 = vmatpush.msra.mxu0 0.0
    %816 = vmatpush.msra.mxu0 0.0
    %817 = vmatpush.msra.mxu0 0.0
    %818 = vmatpush.msra.mxu0 0.0
    %819 = vmatpush.msra.mxu0 0.0
    %820 = vmatpush.msra.mxu0 0.0
    %821 = vmatpush.msra.mxu0 0.0
    %822 = vmatpush.msra.mxu0 0.0
    %823 = vmatpush.msra.mxu0 0.0
    %824 = vmatpush.msra.mxu0 %v804
    %825 = vmatmul.f32.gmra.mxu0 %v807
    %v826 = vpop.f32.mrf.mxu0
    %v827 = vadd.f32 0.0, %v826
    %828 = vdwg.mxu0
    %829 = vrot.lane.b32.xlu0 %v224, 40
    %v830 = vpop.permute.xlu0 %829
    %v833 = vsel %vm229, %v802, 0
    %835 = vmatpush.msra.mxu0 0.0
    %836 = vmatpush.msra.mxu0 0.0
    %837 = vmatpush.msra.mxu0 0.0
    %838 = vmatpush.msra.mxu0 0.0
    %839 = vmatpush.msra.mxu0 0.0
    %840 = vmatpush.msra.mxu0 0.0
    %841 = vmatpush.msra.mxu0 0.0
    %842 = vmatpush.msra.mxu0 0.0
    %843 = vmatpush.msra.mxu0 0.0
    %844 = vmatpush.msra.mxu0 0.0
    %845 = vmatpush.msra.mxu0 0.0
    %846 = vmatpush.msra.mxu0 0.0
    %847 = vmatpush.msra.mxu0 0.0
    %848 = vmatpush.msra.mxu0 0.0
    %849 = vmatpush.msra.mxu0 0.0
    %850 = vmatpush.msra.mxu0 %v830
    %851 = vmatmul.f32.gmra.mxu0 %v833
    %v852 = vpop.f32.mrf.mxu0
    %v853 = vadd.f32 0.0, %v852
    %854 = vdwg.mxu0
    %s855 = scalar_lea.vmem %s3, 24
    %v856 = vld [vmem:[%s855] sm:$0xff]
    %v858 = vsel %vm229, %v827, 0
    %v861 = vsel %vm229, %v853, 0
    %863 = vmatpush.msra.mxu0 0.0
    %864 = vmatpush.msra.mxu0 0.0
    %865 = vmatpush.msra.mxu0 0.0
    %866 = vmatpush.msra.mxu0 0.0
    %867 = vmatpush.msra.mxu0 0.0
    %868 = vmatpush.msra.mxu0 0.0
    %869 = vmatpush.msra.mxu0 0.0
    %870 = vmatpush.msra.mxu0 0.0
    %871 = vmatpush.msra.mxu0 0.0
    %872 = vmatpush.msra.mxu0 0.0
    %873 = vmatpush.msra.mxu0 0.0
    %874 = vmatpush.msra.mxu0 0.0
    %875 = vmatpush.msra.mxu0 0.0
    %876 = vmatpush.msra.mxu0 0.0
    %877 = vmatpush.msra.mxu0 0.0
    %878 = vmatpush.msra.mxu0 %v856
    %879 = vmatmul.f32.gmra.mxu0 %v858
    %v880 = vpop.f32.mrf.mxu0
    %v881 = vadd.f32 0.0, %v880
    %882 = vmatmul.f32.gmra.mxu0 %v861
    %v883 = vpop.f32.mrf.mxu0
    %v884 = vadd.f32 0.0, %v883
    %885 = vdwg.mxu0
    %v886 = vadd.f32 %v719, %v881
    %v887 = vadd.f32 %v720, %v884
    %v888 = vadd.f32 %v102, %v886
    %v889 = vadd.f32 %v103, %v887
    %v890 = vperm.slane %v117, 0
    %v891 = vadd.f32 %v888, %v890
    %v892 = vadd.f32 %v889, %v890
    %v893 = vsel %vm118, %v891, 0.0
    %894 = vadd.xlane.f32.xlu0 %v893
    %v895 = vpop.xlane.xlu0 %894
    %v896 = vsel %vm118, %v892, 0.0
    %897 = vadd.xlane.f32.xlu0 %v896
    %v898 = vpop.xlane.xlu0 %897
    %v899 = vmul.f32 %v895, %v131
    %v900 = vmul.f32 %v898, %v131
    %v901 = vsub.f32 %v891, %v899
    %v902 = vsub.f32 %v892, %v900
    %v903 = vmul.f32 %v901, %v901
    %v904 = vmul.f32 %v902, %v902
    %v905 = vsel %vm118, %v903, 0.0
    %906 = vadd.xlane.f32.xlu0 %v905
    %v907 = vpop.xlane.xlu0 %906
    %v908 = vsel %vm118, %v904, 0.0
    %909 = vadd.xlane.f32.xlu0 %v908
    %v910 = vpop.xlane.xlu0 %909
    %v911 = vmul.f32 %v907, %v150
    %v912 = vmul.f32 %v910, %v150
    %v913 = vrsqrt.pop %v911
    %v914 = vmul.f32 %v913, %v911
    %v915 = vmul.f32 %v914, %v913
    %v916 = vmul.f32 0.5, %v915
    %v917 = vsub.f32 1.5, %v916
    %v918 = vmul.f32 %v913, %v917
    %v919 = vmul.f32 %v911, %v918
    %vm920 = vcmp.eq.f32.partialorder %v911, inf
    %v921 = vsel %vm920, %v911, %v919
    %vm922 = vcmp.eq.f32.partialorder %v911, 0.0
    %v923 = vand.u32 %v911, 2147483648
    %v924 = vsel %vm922, %v923, %v921
    %v925 = vrsqrt.pop %v912
    %v926 = vmul.f32 %v925, %v912
    %v927 = vmul.f32 %v926, %v925
    %v928 = vmul.f32 0.5, %v927
    %v929 = vsub.f32 1.5, %v928
    %v930 = vmul.f32 %v925, %v929
    %v931 = vmul.f32 %v912, %v930
    %vm932 = vcmp.eq.f32.partialorder %v912, inf
    %v933 = vsel %vm932, %v912, %v931
    %vm934 = vcmp.eq.f32.partialorder %v912, 0.0
    %v935 = vand.u32 %v912, 2147483648
    %v936 = vsel %vm934, %v935, %v933
    %v937 = vperm.slane %v116, 2
    %v938 = vmul.f32 %v937, %v901
    %v939 = vmul.f32 %v937, %v902
    %v940 = vadd.f32 %v924, 1e-06
    %v941 = vadd.f32 %v936, 1e-06
    %v942 = vrcp.pop %v940
    %v943 = vrcp.pop %v941
    %v944 = vmul.f32 %v938, %v942
    %v945 = vmul.f32 %v939, %v943
    %v946 = vperm.slane %v116, 3
    %v947 = vadd.f32 %v944, %v946
    %v948 = vadd.f32 %v945, %v946
    %v949 = vld [vmem:[%s4] sm:$0xff]
    %v950 = vld [vmem:[%s4 + $0x8] sm:$0xff]
    %v951 = vld [vmem:[%s4 + $0x10] sm:$0xff]
    %v952 = vld [vmem:[%s4 + $0x18] sm:$0xff]
    %v953 = vld [vmem:[%s9] sm:$0x1]
    %v955 = vperm.slane %v953, 0
    %v958 = vsel %vm118, %v947, 0
    %v961 = vsel %vm118, %v948, 0
    %963 = vmatpush.msra.mxu0 0.0
    %964 = vmatpush.msra.mxu0 0.0
    %965 = vmatpush.msra.mxu0 0.0
    %966 = vmatpush.msra.mxu0 0.0
    %967 = vmatpush.msra.mxu0 0.0
    %968 = vmatpush.msra.mxu0 0.0
    %969 = vmatpush.msra.mxu0 0.0
    %970 = vmatpush.msra.mxu0 0.0
    %971 = vmatpush.msra.mxu0 0.0
    %972 = vmatpush.msra.mxu0 0.0
    %973 = vmatpush.msra.mxu0 0.0
    %974 = vmatpush.msra.mxu0 0.0
    %975 = vmatpush.msra.mxu0 %v952
    %976 = vmatpush.msra.mxu0 %v951
    %977 = vmatpush.msra.mxu0 %v950
    %978 = vmatpush.msra.mxu0 %v949
    %979 = vmatmul.f32.gmra.mxu0 %v958
    %v980 = vpop.f32.mrf.mxu0
    %v981 = vadd.f32 %v955, %v980
    %982 = vmatmul.f32.gmra.mxu0 %v961
    %v983 = vpop.f32.mrf.mxu0
    %v984 = vadd.f32 %v955, %v983
    %985 = vdwg.mxu0
    %v986 = vmax.f32 %v981, 0.0
    %v987 = vmax.f32 %v984, 0.0
    %v988 = vld [vmem:[%s5] sm:$0xff]
    %v989 = vld [vmem:[%s5 + $0x8] sm:$0xff]
    %v990 = vld [vmem:[%s5 + $0x10] sm:$0xff]
    %v991 = vld [vmem:[%s5 + $0x18] sm:$0xff]
    %v992 = vld [vmem:[%s5 + $0x20] sm:$0xff]
    %v993 = vld [vmem:[%s5 + $0x28] sm:$0xff]
    %v994 = vld [vmem:[%s5 + $0x30] sm:$0xff]
    %v995 = vld [vmem:[%s5 + $0x38] sm:$0xff]
    %vm996 = vcmask 523264
    %v998 = vsel %vm996, %v986, 0
    %v1001 = vsel %vm996, %v987, 0
    %1003 = vmatpush.msra.mxu0 0.0
    %1004 = vmatpush.msra.mxu0 0.0
    %1005 = vmatpush.msra.mxu0 0.0
    %1006 = vmatpush.msra.mxu0 0.0
    %1007 = vmatpush.msra.mxu0 0.0
    %1008 = vmatpush.msra.mxu0 0.0
    %1009 = vmatpush.msra.mxu0 0.0
    %1010 = vmatpush.msra.mxu0 0.0
    %1011 = vmatpush.msra.mxu0 %v995
    %1012 = vmatpush.msra.mxu0 %v994
    %1013 = vmatpush.msra.mxu0 %v993
    %1014 = vmatpush.msra.mxu0 %v992
    %1015 = vmatpush.msra.mxu0 %v991
    %1016 = vmatpush.msra.mxu0 %v990
    %1017 = vmatpush.msra.mxu0 %v989
    %1018 = vmatpush.msra.mxu0 %v988
    %1019 = vmatmul.f32.gmra.mxu0 %v998
    %v1020 = vpop.f32.mrf.mxu0
    %v1021 = vadd.f32 0.0, %v1020
    %1022 = vmatmul.f32.gmra.mxu0 %v1001
    %v1023 = vpop.f32.mrf.mxu0
    %v1024 = vadd.f32 0.0, %v1023
    %1025 = vdwg.mxu0
    %v1026 = vadd.f32 %v891, %v1021
    %v1027 = vadd.f32 %v892, %v1024
    %v1028 = vperm.slane %v117, 1
    %v1029 = vadd.f32 %v1026, %v1028
    %v1030 = vadd.f32 %v1027, %v1028
    %s1031 = scalar_lea.vmem [#allocation7], 4
    %v1032 = vld [vmem:[%s1031] sm:$0xf]
    %s1033 = scalar_lea.vmem %s8, 2
    %v1034 = vld [vmem:[%s1033] sm:$0x3]
    %v1035 = vsel %vm118, %v1029, 0.0
    %1036 = vadd.xlane.f32.xlu0 %v1035
    %v1037 = vpop.xlane.xlu0 %1036
    %v1038 = vsel %vm118, %v1030, 0.0
    %1039 = vadd.xlane.f32.xlu0 %v1038
    %v1040 = vpop.xlane.xlu0 %1039
    %v1041 = vmul.f32 %v1037, %v131
    %v1042 = vmul.f32 %v1040, %v131
    %v1043 = vsub.f32 %v1029, %v1041
    %v1044 = vsub.f32 %v1030, %v1042
    %v1045 = vmul.f32 %v1043, %v1043
    %v1046 = vmul.f32 %v1044, %v1044
    %v1047 = vsel %vm118, %v1045, 0.0
    %1048 = vadd.xlane.f32.xlu0 %v1047
    %v1049 = vpop.xlane.xlu0 %1048
    %v1050 = vsel %vm118, %v1046, 0.0
    %1051 = vadd.xlane.f32.xlu0 %v1050
    %v1052 = vpop.xlane.xlu0 %1051
    %v1053 = vmul.f32 %v1049, %v150
    %v1054 = vmul.f32 %v1052, %v150
    %v1055 = vrsqrt.pop %v1053
    %v1056 = vmul.f32 %v1055, %v1053
    %v1057 = vmul.f32 %v1056, %v1055
    %v1058 = vmul.f32 0.5, %v1057
    %v1059 = vsub.f32 1.5, %v1058
    %v1060 = vmul.f32 %v1055, %v1059
    %v1061 = vmul.f32 %v1053, %v1060
    %vm1062 = vcmp.eq.f32.partialorder %v1053, inf
    %v1063 = vsel %vm1062, %v1053, %v1061
    %vm1064 = vcmp.eq.f32.partialorder %v1053, 0.0
    %v1065 = vand.u32 %v1053, 2147483648
    %v1066 = vsel %vm1064, %v1065, %v1063
    %v1067 = vrsqrt.pop %v1054
    %v1068 = vmul.f32 %v1067, %v1054
    %v1069 = vmul.f32 %v1068, %v1067
    %v1070 = vmul.f32 0.5, %v1069
    %v1071 = vsub.f32 1.5, %v1070
    %v1072 = vmul.f32 %v1067, %v1071
    %v1073 = vmul.f32 %v1054, %v1072
    %vm1074 = vcmp.eq.f32.partialorder %v1054, inf
    %v1075 = vsel %vm1074, %v1054, %v1073
    %vm1076 = vcmp.eq.f32.partialorder %v1054, 0.0
    %v1077 = vand.u32 %v1054, 2147483648
    %v1078 = vsel %vm1076, %v1077, %v1075
    %v1079 = vperm.slane %v1032, 0
    %v1080 = vmul.f32 %v1079, %v1043
    %v1081 = vmul.f32 %v1079, %v1044
    %v1082 = vadd.f32 %v1066, 1e-06
    %v1083 = vadd.f32 %v1078, 1e-06
    %v1084 = vrcp.pop %v1082
    %v1085 = vrcp.pop %v1083
    %v1086 = vmul.f32 %v1080, %v1084
    %v1087 = vmul.f32 %v1081, %v1085
    %v1088 = vperm.slane %v1032, 1
    %v1089 = vadd.f32 %v1086, %v1088
    %v1090 = vadd.f32 %v1087, %v1088
    %s1091 = scalar_lea.vmem %s2, 32
    %v1092 = vld [vmem:[%s1091] sm:$0xff]
    %v1093 = vld [vmem:[%s1091 + $0x8] sm:$0xff]
    %v1094 = vld [vmem:[%s1091 + $0x10] sm:$0xff]
    %v1095 = vld [vmem:[%s1091 + $0x18] sm:$0xff]
    %s1096 = scalar_lea.vmem [#allocation8], 1
    %v1097 = vld [vmem:[%s1096] sm:$0x1]
    %v1099 = vperm.slane %v1097, 0
    %v1102 = vsel %vm118, %v1089, 0
    %v1105 = vsel %vm118, %v1090, 0
    %1107 = vmatpush.msra.mxu0 0.0
    %1108 = vmatpush.msra.mxu0 0.0
    %1109 = vmatpush.msra.mxu0 0.0
    %1110 = vmatpush.msra.mxu0 0.0
    %1111 = vmatpush.msra.mxu0 0.0
    %1112 = vmatpush.msra.mxu0 0.0
    %1113 = vmatpush.msra.mxu0 0.0
    %1114 = vmatpush.msra.mxu0 0.0
    %1115 = vmatpush.msra.mxu0 0.0
    %1116 = vmatpush.msra.mxu0 0.0
    %1117 = vmatpush.msra.mxu0 0.0
    %1118 = vmatpush.msra.mxu0 0.0
    %1119 = vmatpush.msra.mxu0 %v1095
    %1120 = vmatpush.msra.mxu0 %v1094
    %1121 = vmatpush.msra.mxu0 %v1093
    %1122 = vmatpush.msra.mxu0 %v1092
    %1123 = vmatmul.f32.gmra.mxu0 %v1102
    %v1124 = vpop.f32.mrf.mxu0
    %v1125 = vadd.f32 %v1099, %v1124
    %1126 = vmatmul.f32.gmra.mxu0 %v1105
    %v1127 = vpop.f32.mrf.mxu0
    %v1128 = vadd.f32 %v1099, %v1127
    %1129 = vdwg.mxu0
    %1131 = vrot.lane.b32.xlu0 %v1125, 96
    %v1132 = vpop.permute.xlu0 %1131
    %v1133 = vsel %vm229, %v1125, 0
    %v1135 = vsel %vm229, %v1132, 0
    %1137 = vmatpush.xpose.msra.mxu0 0.0
    %1138 = vmatpush.xpose.msra.mxu0 0.0
    %1139 = vmatpush.xpose.msra.mxu0 0.0
    %1140 = vmatpush.xpose.msra.mxu0 0.0
    %1141 = vmatpush.xpose.msra.mxu0 0.0
    %1142 = vmatpush.xpose.msra.mxu0 0.0
    %1143 = vmatpush.xpose.msra.mxu0 0.0
    %1144 = vmatpush.xpose.msra.mxu0 0.0
    %1145 = vmatpush.xpose.msra.mxu0 0.0
    %1146 = vmatpush.xpose.msra.mxu0 0.0
    %1147 = vmatpush.xpose.msra.mxu0 0.0
    %1148 = vmatpush.xpose.msra.mxu0 0.0
    %1149 = vmatpush.xpose.msra.mxu0 0.0
    %1150 = vmatpush.xpose.msra.mxu0 0.0
    %1151 = vmatpush.xpose.msra.mxu0 0.0
    %1152 = vmatpush.xpose.msra.mxu0 %v1135
    %1153 = vmatmul.f32.gmra.mxu0 %v1133
    %v1154 = vpop.f32.mrf.mxu0
    %v1155 = vadd.f32 0.0, %v1154
    %1156 = vdwg.mxu0
    %1158 = vrot.lane.b32.xlu0 %v1128, 96
    %v1159 = vpop.permute.xlu0 %1158
    %v1160 = vsel %vm229, %v1128, 0
    %v1162 = vsel %vm229, %v1159, 0
    %1164 = vmatpush.xpose.msra.mxu0 0.0
    %1165 = vmatpush.xpose.msra.mxu0 0.0
    %1166 = vmatpush.xpose.msra.mxu0 0.0
    %1167 = vmatpush.xpose.msra.mxu0 0.0
    %1168 = vmatpush.xpose.msra.mxu0 0.0
    %1169 = vmatpush.xpose.msra.mxu0 0.0
    %1170 = vmatpush.xpose.msra.mxu0 0.0
    %1171 = vmatpush.xpose.msra.mxu0 0.0
    %1172 = vmatpush.xpose.msra.mxu0 0.0
    %1173 = vmatpush.xpose.msra.mxu0 0.0
    %1174 = vmatpush.xpose.msra.mxu0 0.0
    %1175 = vmatpush.xpose.msra.mxu0 0.0
    %1176 = vmatpush.xpose.msra.mxu0 0.0
    %1177 = vmatpush.xpose.msra.mxu0 0.0
    %1178 = vmatpush.xpose.msra.mxu0 0.0
    %1179 = vmatpush.xpose.msra.mxu0 %v1162
    %1180 = vmatmul.f32.gmra.mxu0 %v1160
    %v1181 = vpop.f32.mrf.mxu0
    %v1182 = vadd.f32 0.0, %v1181
    %1183 = vdwg.mxu0
    %v1184 = vmul.f32 %v1155, 0.35355338
    %v1185 = vmul.f32 %v1182, 0.35355338
    %v1186 = vadd.f32 %v1184, %v112
    %v1187 = vadd.f32 %v1185, %v113
    %v1188 = vsel %vm229, %v1186, -inf
    %1189 = vmax.xlane.f32.xlu0 %v1188
    %v1190 = vpop.xlane.xlu0 %1189
    %v1191 = vsel %vm229, %v1187, -inf
    %1192 = vmax.xlane.f32.xlu0 %v1191
    %v1193 = vpop.xlane.xlu0 %1192
    %v1194 = vsub.f32 %v1186, %v1190
    %v1195 = vsub.f32 %v1187, %v1193
    %v1196 = vmul.f32 %v1194, 1.442695
    %v1197 = vpow.pop %v1196
    %v1198 = vmul.f32 %v1195, 1.442695
    %v1199 = vpow.pop %v1198
    %v1200 = vsel %vm229, %v1197, 0.0
    %1201 = vadd.xlane.f32.xlu0 %v1200
    %v1202 = vpop.xlane.xlu0 %1201
    %v1203 = vsel %vm229, %v1199, 0.0
    %1204 = vadd.xlane.f32.xlu0 %v1203
    %v1205 = vpop.xlane.xlu0 %1204
    %v1206 = vrcp.pop %v1202
    %v1207 = vrcp.pop %v1205
    %v1208 = vmul.f32 %v1197, %v1206
    %v1209 = vmul.f32 %v1199, %v1207
    %1210 = vrot.lane.b32.xlu0 %v1125, 64
    %v1211 = vpop.permute.xlu0 %1210
    %v1214 = vsel %vm229, %v1208, 0
    %1216 = vmatpush.msra.mxu0 0.0
    %1217 = vmatpush.msra.mxu0 0.0
    %1218 = vmatpush.msra.mxu0 0.0
    %1219 = vmatpush.msra.mxu0 0.0
    %1220 = vmatpush.msra.mxu0 0.0
    %1221 = vmatpush.msra.mxu0 0.0
    %1222 = vmatpush.msra.mxu0 0.0
    %1223 = vmatpush.msra.mxu0 0.0
    %1224 = vmatpush.msra.mxu0 0.0
    %1225 = vmatpush.msra.mxu0 0.0
    %1226 = vmatpush.msra.mxu0 0.0
    %1227 = vmatpush.msra.mxu0 0.0
    %1228 = vmatpush.msra.mxu0 0.0
    %1229 = vmatpush.msra.mxu0 0.0
    %1230 = vmatpush.msra.mxu0 0.0
    %1231 = vmatpush.msra.mxu0 %v1211
    %1232 = vmatmul.f32.gmra.mxu0 %v1214
    %v1233 = vpop.f32.mrf.mxu0
    %v1234 = vadd.f32 0.0, %v1233
    %1235 = vdwg.mxu0
    %1236 = vrot.lane.b32.xlu0 %v1128, 64
    %v1237 = vpop.permute.xlu0 %1236
    %v1240 = vsel %vm229, %v1209, 0
    %1242 = vmatpush.msra.mxu0 0.0
    %1243 = vmatpush.msra.mxu0 0.0
    %1244 = vmatpush.msra.mxu0 0.0
    %1245 = vmatpush.msra.mxu0 0.0
    %1246 = vmatpush.msra.mxu0 0.0
    %1247 = vmatpush.msra.mxu0 0.0
    %1248 = vmatpush.msra.mxu0 0.0
    %1249 = vmatpush.msra.mxu0 0.0
    %1250 = vmatpush.msra.mxu0 0.0
    %1251 = vmatpush.msra.mxu0 0.0
    %1252 = vmatpush.msra.mxu0 0.0
    %1253 = vmatpush.msra.mxu0 0.0
    %1254 = vmatpush.msra.mxu0 0.0
    %1255 = vmatpush.msra.mxu0 0.0
    %1256 = vmatpush.msra.mxu0 0.0
    %1257 = vmatpush.msra.mxu0 %v1237
    %1258 = vmatmul.f32.gmra.mxu0 %v1240
    %v1259 = vpop.f32.mrf.mxu0
    %v1260 = vadd.f32 0.0, %v1259
    %1261 = vdwg.mxu0
    %s1262 = scalar_lea.vmem %s3, 32
    %v1263 = vld [vmem:[%s1262] sm:$0xff]
    %1264 = vrot.lane.b32.xlu0 %v1125, 120
    %v1265 = vpop.permute.xlu0 %1264
    %1266 = vrot.lane.b32.xlu0 %v1125, 88
    %v1267 = vpop.permute.xlu0 %1266
    %v1268 = vsel %vm229, %v1265, 0
    %v1270 = vsel %vm229, %v1267, 0
    %1272 = vmatpush.xpose.msra.mxu0 0.0
    %1273 = vmatpush.xpose.msra.mxu0 0.0
    %1274 = vmatpush.xpose.msra.mxu0 0.0
    %1275 = vmatpush.xpose.msra.mxu0 0.0
    %1276 = vmatpush.xpose.msra.mxu0 0.0
    %1277 = vmatpush.xpose.msra.mxu0 0.0
    %1278 = vmatpush.xpose.msra.mxu0 0.0
    %1279 = vmatpush.xpose.msra.mxu0 0.0
    %1280 = vmatpush.xpose.msra.mxu0 0.0
    %1281 = vmatpush.xpose.msra.mxu0 0.0
    %1282 = vmatpush.xpose.msra.mxu0 0.0
    %1283 = vmatpush.xpose.msra.mxu0 0.0
    %1284 = vmatpush.xpose.msra.mxu0 0.0
    %1285 = vmatpush.xpose.msra.mxu0 0.0
    %1286 = vmatpush.xpose.msra.mxu0 0.0
    %1287 = vmatpush.xpose.msra.mxu0 %v1270
    %1288 = vmatmul.f32.gmra.mxu0 %v1268
    %v1289 = vpop.f32.mrf.mxu0
    %v1290 = vadd.f32 0.0, %v1289
    %1291 = vdwg.mxu0
    %1292 = vrot.lane.b32.xlu0 %v1128, 120
    %v1293 = vpop.permute.xlu0 %1292
    %1294 = vrot.lane.b32.xlu0 %v1128, 88
    %v1295 = vpop.permute.xlu0 %1294
    %v1296 = vsel %vm229, %v1293, 0
    %v1298 = vsel %vm229, %v1295, 0
    %1300 = vmatpush.xpose.msra.mxu0 0.0
    %1301 = vmatpush.xpose.msra.mxu0 0.0
    %1302 = vmatpush.xpose.msra.mxu0 0.0
    %1303 = vmatpush.xpose.msra.mxu0 0.0
    %1304 = vmatpush.xpose.msra.mxu0 0.0
    %1305 = vmatpush.xpose.msra.mxu0 0.0
    %1306 = vmatpush.xpose.msra.mxu0 0.0
    %1307 = vmatpush.xpose.msra.mxu0 0.0
    %1308 = vmatpush.xpose.msra.mxu0 0.0
    %1309 = vmatpush.xpose.msra.mxu0 0.0
    %1310 = vmatpush.xpose.msra.mxu0 0.0
    %1311 = vmatpush.xpose.msra.mxu0 0.0
    %1312 = vmatpush.xpose.msra.mxu0 0.0
    %1313 = vmatpush.xpose.msra.mxu0 0.0
    %1314 = vmatpush.xpose.msra.mxu0 0.0
    %1315 = vmatpush.xpose.msra.mxu0 %v1298
    %1316 = vmatmul.f32.gmra.mxu0 %v1296
    %v1317 = vpop.f32.mrf.mxu0
    %v1318 = vadd.f32 0.0, %v1317
    %1319 = vdwg.mxu0
    %v1320 = vmul.f32 %v1290, 0.35355338
    %v1321 = vmul.f32 %v1318, 0.35355338
    %v1322 = vadd.f32 %v1320, %v112
    %v1323 = vadd.f32 %v1321, %v113
    %v1324 = vsel %vm229, %v1322, -inf
    %1325 = vmax.xlane.f32.xlu0 %v1324
    %v1326 = vpop.xlane.xlu0 %1325
    %v1327 = vsel %vm229, %v1323, -inf
    %1328 = vmax.xlane.f32.xlu0 %v1327
    %v1329 = vpop.xlane.xlu0 %1328
    %v1330 = vsub.f32 %v1322, %v1326
    %v1331 = vsub.f32 %v1323, %v1329
    %v1332 = vmul.f32 %v1330, 1.442695
    %v1333 = vpow.pop %v1332
    %v1334 = vmul.f32 %v1331, 1.442695
    %v1335 = vpow.pop %v1334
    %v1336 = vsel %vm229, %v1333, 0.0
    %1337 = vadd.xlane.f32.xlu0 %v1336
    %v1338 = vpop.xlane.xlu0 %1337
    %v1339 = vsel %vm229, %v1335, 0.0
    %1340 = vadd.xlane.f32.xlu0 %v1339
    %v1341 = vpop.xlane.xlu0 %1340
    %v1342 = vrcp.pop %v1338
    %v1343 = vrcp.pop %v1341
    %v1344 = vmul.f32 %v1333, %v1342
    %v1345 = vmul.f32 %v1335, %v1343
    %1346 = vrot.lane.b32.xlu0 %v1125, 56
    %v1347 = vpop.permute.xlu0 %1346
    %v1350 = vsel %vm229, %v1344, 0
    %1352 = vmatpush.msra.mxu0 0.0
    %1353 = vmatpush.msra.mxu0 0.0
    %1354 = vmatpush.msra.mxu0 0.0
    %1355 = vmatpush.msra.mxu0 0.0
    %1356 = vmatpush.msra.mxu0 0.0
    %1357 = vmatpush.msra.mxu0 0.0
    %1358 = vmatpush.msra.mxu0 0.0
    %1359 = vmatpush.msra.mxu0 0.0
    %1360 = vmatpush.msra.mxu0 0.0
    %1361 = vmatpush.msra.mxu0 0.0
    %1362 = vmatpush.msra.mxu0 0.0
    %1363 = vmatpush.msra.mxu0 0.0
    %1364 = vmatpush.msra.mxu0 0.0
    %1365 = vmatpush.msra.mxu0 0.0
    %1366 = vmatpush.msra.mxu0 0.0
    %1367 = vmatpush.msra.mxu0 %v1347
    %1368 = vmatmul.f32.gmra.mxu0 %v1350
    %v1369 = vpop.f32.mrf.mxu0
    %v1370 = vadd.f32 0.0, %v1369
    %1371 = vdwg.mxu0
    %1372 = vrot.lane.b32.xlu0 %v1128, 56
    %v1373 = vpop.permute.xlu0 %1372
    %v1376 = vsel %vm229, %v1345, 0
    %1378 = vmatpush.msra.mxu0 0.0
    %1379 = vmatpush.msra.mxu0 0.0
    %1380 = vmatpush.msra.mxu0 0.0
    %1381 = vmatpush.msra.mxu0 0.0
    %1382 = vmatpush.msra.mxu0 0.0
    %1383 = vmatpush.msra.mxu0 0.0
    %1384 = vmatpush.msra.mxu0 0.0
    %1385 = vmatpush.msra.mxu0 0.0
    %1386 = vmatpush.msra.mxu0 0.0
    %1387 = vmatpush.msra.mxu0 0.0
    %1388 = vmatpush.msra.mxu0 0.0
    %1389 = vmatpush.msra.mxu0 0.0
    %1390 = vmatpush.msra.mxu0 0.0
    %1391 = vmatpush.msra.mxu0 0.0
    %1392 = vmatpush.msra.mxu0 0.0
    %1393 = vmatpush.msra.mxu0 %v1373
    %1394 = vmatmul.f32.gmra.mxu0 %v1376
    %v1395 = vpop.f32.mrf.mxu0
    %v1396 = vadd.f32 0.0, %v1395
    %1397 = vdwg.mxu0
    %s1398 = scalar_lea.vmem %s3, 40
    %v1399 = vld [vmem:[%s1398] sm:$0xff]
    %v1401 = vsel %vm229, %v1370, 0
    %v1404 = vsel %vm229, %v1396, 0
    %1406 = vmatpush.msra.mxu0 0.0
    %1407 = vmatpush.msra.mxu0 0.0
    %1408 = vmatpush.msra.mxu0 0.0
    %1409 = vmatpush.msra.mxu0 0.0
    %1410 = vmatpush.msra.mxu0 0.0
    %1411 = vmatpush.msra.mxu0 0.0
    %1412 = vmatpush.msra.mxu0 0.0
    %1413 = vmatpush.msra.mxu0 0.0
    %1414 = vmatpush.msra.mxu0 0.0
    %1415 = vmatpush.msra.mxu0 0.0
    %1416 = vmatpush.msra.mxu0 0.0
    %1417 = vmatpush.msra.mxu0 0.0
    %1418 = vmatpush.msra.mxu0 0.0
    %1419 = vmatpush.msra.mxu0 0.0
    %1420 = vmatpush.msra.mxu0 0.0
    %1421 = vmatpush.msra.mxu0 %v1399
    %1422 = vmatmul.f32.gmra.mxu0 %v1401
    %v1423 = vpop.f32.mrf.mxu0
    %v1424 = vadd.f32 0.0, %v1423
    %1425 = vmatmul.f32.gmra.mxu0 %v1404
    %v1426 = vpop.f32.mrf.mxu0
    %v1427 = vadd.f32 0.0, %v1426
    %1428 = vdwg.mxu0
    %v1430 = vsel %vm229, %v1234, 0
    %v1433 = vsel %vm229, %v1260, 0
    %1435 = vmatpush.msra.mxu0 0.0
    %1436 = vmatpush.msra.mxu0 0.0
    %1437 = vmatpush.msra.mxu0 0.0
    %1438 = vmatpush.msra.mxu0 0.0
    %1439 = vmatpush.msra.mxu0 0.0
    %1440 = vmatpush.msra.mxu0 0.0
    %1441 = vmatpush.msra.mxu0 0.0
    %1442 = vmatpush.msra.mxu0 0.0
    %1443 = vmatpush.msra.mxu0 0.0
    %1444 = vmatpush.msra.mxu0 0.0
    %1445 = vmatpush.msra.mxu0 0.0
    %1446 = vmatpush.msra.mxu0 0.0
    %1447 = vmatpush.msra.mxu0 0.0
    %1448 = vmatpush.msra.mxu0 0.0
    %1449 = vmatpush.msra.mxu0 0.0
    %1450 = vmatpush.msra.mxu0 %v1263
    %1451 = vmatmul.f32.gmra.mxu0 %v1430
    %v1452 = vpop.f32.mrf.mxu0
    %v1453 = vadd.f32 %v1424, %v1452
    %1454 = vmatmul.f32.gmra.mxu0 %v1433
    %v1455 = vpop.f32.mrf.mxu0
    %v1456 = vadd.f32 %v1427, %v1455
    %1457 = vdwg.mxu0
    %1458 = vrot.lane.b32.xlu0 %v1125, 112
    %v1459 = vpop.permute.xlu0 %1458
    %1460 = vrot.lane.b32.xlu0 %v1125, 80
    %v1461 = vpop.permute.xlu0 %1460
    %v1462 = vsel %vm229, %v1459, 0
    %v1464 = vsel %vm229, %v1461, 0
    %1466 = vmatpush.xpose.msra.mxu0 0.0
    %1467 = vmatpush.xpose.msra.mxu0 0.0
    %1468 = vmatpush.xpose.msra.mxu0 0.0
    %1469 = vmatpush.xpose.msra.mxu0 0.0
    %1470 = vmatpush.xpose.msra.mxu0 0.0
    %1471 = vmatpush.xpose.msra.mxu0 0.0
    %1472 = vmatpush.xpose.msra.mxu0 0.0
    %1473 = vmatpush.xpose.msra.mxu0 0.0
    %1474 = vmatpush.xpose.msra.mxu0 0.0
    %1475 = vmatpush.xpose.msra.mxu0 0.0
    %1476 = vmatpush.xpose.msra.mxu0 0.0
    %1477 = vmatpush.xpose.msra.mxu0 0.0
    %1478 = vmatpush.xpose.msra.mxu0 0.0
    %1479 = vmatpush.xpose.msra.mxu0 0.0
    %1480 = vmatpush.xpose.msra.mxu0 0.0
    %1481 = vmatpush.xpose.msra.mxu0 %v1464
    %1482 = vmatmul.f32.gmra.mxu0 %v1462
    %v1483 = vpop.f32.mrf.mxu0
    %v1484 = vadd.f32 0.0, %v1483
    %1485 = vdwg.mxu0
    %1486 = vrot.lane.b32.xlu0 %v1128, 112
    %v1487 = vpop.permute.xlu0 %1486
    %1488 = vrot.lane.b32.xlu0 %v1128, 80
    %v1489 = vpop.permute.xlu0 %1488
    %v1490 = vsel %vm229, %v1487, 0
    %v1492 = vsel %vm229, %v1489, 0
    %1494 = vmatpush.xpose.msra.mxu0 0.0
    %1495 = vmatpush.xpose.msra.mxu0 0.0
    %1496 = vmatpush.xpose.msra.mxu0 0.0
    %1497 = vmatpush.xpose.msra.mxu0 0.0
    %1498 = vmatpush.xpose.msra.mxu0 0.0
    %1499 = vmatpush.xpose.msra.mxu0 0.0
    %1500 = vmatpush.xpose.msra.mxu0 0.0
    %1501 = vmatpush.xpose.msra.mxu0 0.0
    %1502 = vmatpush.xpose.msra.mxu0 0.0
    %1503 = vmatpush.xpose.msra.mxu0 0.0
    %1504 = vmatpush.xpose.msra.mxu0 0.0
    %1505 = vmatpush.xpose.msra.mxu0 0.0
    %1506 = vmatpush.xpose.msra.mxu0 0.0
    %1507 = vmatpush.xpose.msra.mxu0 0.0
    %1508 = vmatpush.xpose.msra.mxu0 0.0
    %1509 = vmatpush.xpose.msra.mxu0 %v1492
    %1510 = vmatmul.f32.gmra.mxu0 %v1490
    %v1511 = vpop.f32.mrf.mxu0
    %v1512 = vadd.f32 0.0, %v1511
    %1513 = vdwg.mxu0
    %v1514 = vmul.f32 %v1484, 0.35355338
    %v1515 = vmul.f32 %v1512, 0.35355338
    %v1516 = vadd.f32 %v1514, %v112
    %v1517 = vadd.f32 %v1515, %v113
    %v1518 = vsel %vm229, %v1516, -inf
    %1519 = vmax.xlane.f32.xlu0 %v1518
    %v1520 = vpop.xlane.xlu0 %1519
    %v1521 = vsel %vm229, %v1517, -inf
    %1522 = vmax.xlane.f32.xlu0 %v1521
    %v1523 = vpop.xlane.xlu0 %1522
    %v1524 = vsub.f32 %v1516, %v1520
    %v1525 = vsub.f32 %v1517, %v1523
    %v1526 = vmul.f32 %v1524, 1.442695
    %v1527 = vpow.pop %v1526
    %v1528 = vmul.f32 %v1525, 1.442695
    %v1529 = vpow.pop %v1528
    %v1530 = vsel %vm229, %v1527, 0.0
    %1531 = vadd.xlane.f32.xlu0 %v1530
    %v1532 = vpop.xlane.xlu0 %1531
    %v1533 = vsel %vm229, %v1529, 0.0
    %1534 = vadd.xlane.f32.xlu0 %v1533
    %v1535 = vpop.xlane.xlu0 %1534
    %v1536 = vrcp.pop %v1532
    %v1537 = vrcp.pop %v1535
    %v1538 = vmul.f32 %v1527, %v1536
    %v1539 = vmul.f32 %v1529, %v1537
    %1540 = vrot.lane.b32.xlu0 %v1125, 48
    %v1541 = vpop.permute.xlu0 %1540
    %v1544 = vsel %vm229, %v1538, 0
    %1546 = vmatpush.msra.mxu0 0.0
    %1547 = vmatpush.msra.mxu0 0.0
    %1548 = vmatpush.msra.mxu0 0.0
    %1549 = vmatpush.msra.mxu0 0.0
    %1550 = vmatpush.msra.mxu0 0.0
    %1551 = vmatpush.msra.mxu0 0.0
    %1552 = vmatpush.msra.mxu0 0.0
    %1553 = vmatpush.msra.mxu0 0.0
    %1554 = vmatpush.msra.mxu0 0.0
    %1555 = vmatpush.msra.mxu0 0.0
    %1556 = vmatpush.msra.mxu0 0.0
    %1557 = vmatpush.msra.mxu0 0.0
    %1558 = vmatpush.msra.mxu0 0.0
    %1559 = vmatpush.msra.mxu0 0.0
    %1560 = vmatpush.msra.mxu0 0.0
    %1561 = vmatpush.msra.mxu0 %v1541
    %1562 = vmatmul.f32.gmra.mxu0 %v1544
    %v1563 = vpop.f32.mrf.mxu0
    %v1564 = vadd.f32 0.0, %v1563
    %1565 = vdwg.mxu0
    %1566 = vrot.lane.b32.xlu0 %v1128, 48
    %v1567 = vpop.permute.xlu0 %1566
    %v1570 = vsel %vm229, %v1539, 0
    %1572 = vmatpush.msra.mxu0 0.0
    %1573 = vmatpush.msra.mxu0 0.0
    %1574 = vmatpush.msra.mxu0 0.0
    %1575 = vmatpush.msra.mxu0 0.0
    %1576 = vmatpush.msra.mxu0 0.0
    %1577 = vmatpush.msra.mxu0 0.0
    %1578 = vmatpush.msra.mxu0 0.0
    %1579 = vmatpush.msra.mxu0 0.0
    %1580 = vmatpush.msra.mxu0 0.0
    %1581 = vmatpush.msra.mxu0 0.0
    %1582 = vmatpush.msra.mxu0 0.0
    %1583 = vmatpush.msra.mxu0 0.0
    %1584 = vmatpush.msra.mxu0 0.0
    %1585 = vmatpush.msra.mxu0 0.0
    %1586 = vmatpush.msra.mxu0 0.0
    %1587 = vmatpush.msra.mxu0 %v1567
    %1588 = vmatmul.f32.gmra.mxu0 %v1570
    %v1589 = vpop.f32.mrf.mxu0
    %v1590 = vadd.f32 0.0, %v1589
    %1591 = vdwg.mxu0
    %s1592 = scalar_lea.vmem %s3, 48
    %v1593 = vld [vmem:[%s1592] sm:$0xff]
    %v1595 = vsel %vm229, %v1564, 0
    %v1598 = vsel %vm229, %v1590, 0
    %1600 = vmatpush.msra.mxu0 0.0
    %1601 = vmatpush.msra.mxu0 0.0
    %1602 = vmatpush.msra.mxu0 0.0
    %1603 = vmatpush.msra.mxu0 0.0
    %1604 = vmatpush.msra.mxu0 0.0
    %1605 = vmatpush.msra.mxu0 0.0
    %1606 = vmatpush.msra.mxu0 0.0
    %1607 = vmatpush.msra.mxu0 0.0
    %1608 = vmatpush.msra.mxu0 0.0
    %1609 = vmatpush.msra.mxu0 0.0
    %1610 = vmatpush.msra.mxu0 0.0
    %1611 = vmatpush.msra.mxu0 0.0
    %1612 = vmatpush.msra.mxu0 0.0
    %1613 = vmatpush.msra.mxu0 0.0
    %1614 = vmatpush.msra.mxu0 0.0
    %1615 = vmatpush.msra.mxu0 %v1593
    %1616 = vmatmul.f32.gmra.mxu0 %v1595
    %v1617 = vpop.f32.mrf.mxu0
    %v1618 = vadd.f32 0.0, %v1617
    %1619 = vmatmul.f32.gmra.mxu0 %v1598
    %v1620 = vpop.f32.mrf.mxu0
    %v1621 = vadd.f32 0.0, %v1620
    %1622 = vdwg.mxu0
    %v1623 = vadd.f32 %v1453, %v1618
    %v1624 = vadd.f32 %v1456, %v1621
    %1625 = vrot.lane.b32.xlu0 %v1125, 104
    %v1626 = vpop.permute.xlu0 %1625
    %1627 = vrot.lane.b32.xlu0 %v1125, 72
    %v1628 = vpop.permute.xlu0 %1627
    %v1629 = vsel %vm229, %v1626, 0
    %v1631 = vsel %vm229, %v1628, 0
    %1633 = vmatpush.xpose.msra.mxu0 0.0
    %1634 = vmatpush.xpose.msra.mxu0 0.0
    %1635 = vmatpush.xpose.msra.mxu0 0.0
    %1636 = vmatpush.xpose.msra.mxu0 0.0
    %1637 = vmatpush.xpose.msra.mxu0 0.0
    %1638 = vmatpush.xpose.msra.mxu0 0.0
    %1639 = vmatpush.xpose.msra.mxu0 0.0
    %1640 = vmatpush.xpose.msra.mxu0 0.0
    %1641 = vmatpush.xpose.msra.mxu0 0.0
    %1642 = vmatpush.xpose.msra.mxu0 0.0
    %1643 = vmatpush.xpose.msra.mxu0 0.0
    %1644 = vmatpush.xpose.msra.mxu0 0.0
    %1645 = vmatpush.xpose.msra.mxu0 0.0
    %1646 = vmatpush.xpose.msra.mxu0 0.0
    %1647 = vmatpush.xpose.msra.mxu0 0.0
    %1648 = vmatpush.xpose.msra.mxu0 %v1631
    %1649 = vmatmul.f32.gmra.mxu0 %v1629
    %v1650 = vpop.f32.mrf.mxu0
    %v1651 = vadd.f32 0.0, %v1650
    %1652 = vdwg.mxu0
    %1653 = vrot.lane.b32.xlu0 %v1128, 104
    %v1654 = vpop.permute.xlu0 %1653
    %1655 = vrot.lane.b32.xlu0 %v1128, 72
    %v1656 = vpop.permute.xlu0 %1655
    %v1657 = vsel %vm229, %v1654, 0
    %v1659 = vsel %vm229, %v1656, 0
    %1661 = vmatpush.xpose.msra.mxu0 0.0
    %1662 = vmatpush.xpose.msra.mxu0 0.0
    %1663 = vmatpush.xpose.msra.mxu0 0.0
    %1664 = vmatpush.xpose.msra.mxu0 0.0
    %1665 = vmatpush.xpose.msra.mxu0 0.0
    %1666 = vmatpush.xpose.msra.mxu0 0.0
    %1667 = vmatpush.xpose.msra.mxu0 0.0
    %1668 = vmatpush.xpose.msra.mxu0 0.0
    %1669 = vmatpush.xpose.msra.mxu0 0.0
    %1670 = vmatpush.xpose.msra.mxu0 0.0
    %1671 = vmatpush.xpose.msra.mxu0 0.0
    %1672 = vmatpush.xpose.msra.mxu0 0.0
    %1673 = vmatpush.xpose.msra.mxu0 0.0
    %1674 = vmatpush.xpose.msra.mxu0 0.0
    %1675 = vmatpush.xpose.msra.mxu0 0.0
    %1676 = vmatpush.xpose.msra.mxu0 %v1659
    %1677 = vmatmul.f32.gmra.mxu0 %v1657
    %v1678 = vpop.f32.mrf.mxu0
    %v1679 = vadd.f32 0.0, %v1678
    %1680 = vdwg.mxu0
    %v1681 = vmul.f32 %v1651, 0.35355338
    %v1682 = vmul.f32 %v1679, 0.35355338
    %v1683 = vadd.f32 %v1681, %v112
    %v1684 = vadd.f32 %v1682, %v113
    %v1685 = vsel %vm229, %v1683, -inf
    %1686 = vmax.xlane.f32.xlu0 %v1685
    %v1687 = vpop.xlane.xlu0 %1686
    %v1688 = vsel %vm229, %v1684, -inf
    %1689 = vmax.xlane.f32.xlu0 %v1688
    %v1690 = vpop.xlane.xlu0 %1689
    %v1691 = vsub.f32 %v1683, %v1687
    %v1692 = vsub.f32 %v1684, %v1690
    %v1693 = vmul.f32 %v1691, 1.442695
    %v1694 = vpow.pop %v1693
    %v1695 = vmul.f32 %v1692, 1.442695
    %v1696 = vpow.pop %v1695
    %v1697 = vsel %vm229, %v1694, 0.0
    %1698 = vadd.xlane.f32.xlu0 %v1697
    %v1699 = vpop.xlane.xlu0 %1698
    %v1700 = vsel %vm229, %v1696, 0.0
    %1701 = vadd.xlane.f32.xlu0 %v1700
    %v1702 = vpop.xlane.xlu0 %1701
    %v1703 = vrcp.pop %v1699
    %v1704 = vrcp.pop %v1702
    %v1705 = vmul.f32 %v1694, %v1703
    %v1706 = vmul.f32 %v1696, %v1704
    %1707 = vrot.lane.b32.xlu0 %v1125, 40
    %v1708 = vpop.permute.xlu0 %1707
    %v1711 = vsel %vm229, %v1705, 0
    %1713 = vmatpush.msra.mxu0 0.0
    %1714 = vmatpush.msra.mxu0 0.0
    %1715 = vmatpush.msra.mxu0 0.0
    %1716 = vmatpush.msra.mxu0 0.0
    %1717 = vmatpush.msra.mxu0 0.0
    %1718 = vmatpush.msra.mxu0 0.0
    %1719 = vmatpush.msra.mxu0 0.0
    %1720 = vmatpush.msra.mxu0 0.0
    %1721 = vmatpush.msra.mxu0 0.0
    %1722 = vmatpush.msra.mxu0 0.0
    %1723 = vmatpush.msra.mxu0 0.0
    %1724 = vmatpush.msra.mxu0 0.0
    %1725 = vmatpush.msra.mxu0 0.0
    %1726 = vmatpush.msra.mxu0 0.0
    %1727 = vmatpush.msra.mxu0 0.0
    %1728 = vmatpush.msra.mxu0 %v1708
    %1729 = vmatmul.f32.gmra.mxu0 %v1711
    %v1730 = vpop.f32.mrf.mxu0
    %v1731 = vadd.f32 0.0, %v1730
    %1732 = vdwg.mxu0
    %1733 = vrot.lane.b32.xlu0 %v1128, 40
    %v1734 = vpop.permute.xlu0 %1733
    %v1737 = vsel %vm229, %v1706, 0
    %1739 = vmatpush.msra.mxu0 0.0
    %1740 = vmatpush.msra.mxu0 0.0
    %1741 = vmatpush.msra.mxu0 0.0
    %1742 = vmatpush.msra.mxu0 0.0
    %1743 = vmatpush.msra.mxu0 0.0
    %1744 = vmatpush.msra.mxu0 0.0
    %1745 = vmatpush.msra.mxu0 0.0
    %1746 = vmatpush.msra.mxu0 0.0
    %1747 = vmatpush.msra.mxu0 0.0
    %1748 = vmatpush.msra.mxu0 0.0
    %1749 = vmatpush.msra.mxu0 0.0
    %1750 = vmatpush.msra.mxu0 0.0
    %1751 = vmatpush.msra.mxu0 0.0
    %1752 = vmatpush.msra.mxu0 0.0
    %1753 = vmatpush.msra.mxu0 0.0
    %1754 = vmatpush.msra.mxu0 %v1734
    %1755 = vmatmul.f32.gmra.mxu0 %v1737
    %v1756 = vpop.f32.mrf.mxu0
    %v1757 = vadd.f32 0.0, %v1756
    %1758 = vdwg.mxu0
    %s1759 = scalar_lea.vmem %s3, 56
    %v1760 = vld [vmem:[%s1759] sm:$0xff]
    %v1762 = vsel %vm229, %v1731, 0
    %v1765 = vsel %vm229, %v1757, 0
    %1767 = vmatpush.msra.mxu0 0.0
    %1768 = vmatpush.msra.mxu0 0.0
    %1769 = vmatpush.msra.mxu0 0.0
    %1770 = vmatpush.msra.mxu0 0.0
    %1771 = vmatpush.msra.mxu0 0.0
    %1772 = vmatpush.msra.mxu0 0.0
    %1773 = vmatpush.msra.mxu0 0.0
    %1774 = vmatpush.msra.mxu0 0.0
    %1775 = vmatpush.msra.mxu0 0.0
    %1776 = vmatpush.msra.mxu0 0.0
    %1777 = vmatpush.msra.mxu0 0.0
    %1778 = vmatpush.msra.mxu0 0.0
    %1779 = vmatpush.msra.mxu0 0.0
    %1780 = vmatpush.msra.mxu0 0.0
    %1781 = vmatpush.msra.mxu0 0.0
    %1782 = vmatpush.msra.mxu0 %v1760
    %1783 = vmatmul.f32.gmra.mxu0 %v1762
    %v1784 = vpop.f32.mrf.mxu0
    %v1785 = vadd.f32 0.0, %v1784
    %1786 = vmatmul.f32.gmra.mxu0 %v1765
    %v1787 = vpop.f32.mrf.mxu0
    %v1788 = vadd.f32 0.0, %v1787
    %1789 = vdwg.mxu0
    %v1790 = vadd.f32 %v1623, %v1785
    %v1791 = vadd.f32 %v1624, %v1788
    %v1792 = vadd.f32 %v1029, %v1790
    %v1793 = vadd.f32 %v1030, %v1791
    %v1794 = vperm.slane %v1034, 0
    %v1795 = vadd.f32 %v1792, %v1794
    %v1796 = vadd.f32 %v1793, %v1794
    %v1797 = vsel %vm118, %v1795, 0.0
    %1798 = vadd.xlane.f32.xlu0 %v1797
    %v1799 = vpop.xlane.xlu0 %1798
    %v1800 = vsel %vm118, %v1796, 0.0
    %1801 = vadd.xlane.f32.xlu0 %v1800
    %v1802 = vpop.xlane.xlu0 %1801
    %v1803 = vmul.f32 %v1799, %v131
    %v1804 = vmul.f32 %v1802, %v131
    %v1805 = vsub.f32 %v1795, %v1803
    %v1806 = vsub.f32 %v1796, %v1804
    %v1807 = vmul.f32 %v1805, %v1805
    %v1808 = vmul.f32 %v1806, %v1806
    %v1809 = vsel %vm118, %v1807, 0.0
    %1810 = vadd.xlane.f32.xlu0 %v1809
    %v1811 = vpop.xlane.xlu0 %1810
    %v1812 = vsel %vm118, %v1808, 0.0
    %1813 = vadd.xlane.f32.xlu0 %v1812
    %v1814 = vpop.xlane.xlu0 %1813
    %v1815 = vmul.f32 %v1811, %v150
    %v1816 = vmul.f32 %v1814, %v150
    %v1817 = vrsqrt.pop %v1815
    %v1818 = vmul.f32 %v1817, %v1815
    %v1819 = vmul.f32 %v1818, %v1817
    %v1820 = vmul.f32 0.5, %v1819
    %v1821 = vsub.f32 1.5, %v1820
    %v1822 = vmul.f32 %v1817, %v1821
    %v1823 = vmul.f32 %v1815, %v1822
    %vm1824 = vcmp.eq.f32.partialorder %v1815, inf
    %v1825 = vsel %vm1824, %v1815, %v1823
    %vm1826 = vcmp.eq.f32.partialorder %v1815, 0.0
    %v1827 = vand.u32 %v1815, 2147483648
    %v1828 = vsel %vm1826, %v1827, %v1825
    %v1829 = vrsqrt.pop %v1816
    %v1830 = vmul.f32 %v1829, %v1816
    %v1831 = vmul.f32 %v1830, %v1829
    %v1832 = vmul.f32 0.5, %v1831
    %v1833 = vsub.f32 1.5, %v1832
    %v1834 = vmul.f32 %v1829, %v1833
    %v1835 = vmul.f32 %v1816, %v1834
    %vm1836 = vcmp.eq.f32.partialorder %v1816, inf
    %v1837 = vsel %vm1836, %v1816, %v1835
    %vm1838 = vcmp.eq.f32.partialorder %v1816, 0.0
    %v1839 = vand.u32 %v1816, 2147483648
    %v1840 = vsel %vm1838, %v1839, %v1837
    %v1841 = vperm.slane %v1032, 2
    %v1842 = vmul.f32 %v1841, %v1805
    %v1843 = vmul.f32 %v1841, %v1806
    %v1844 = vadd.f32 %v1828, 1e-06
    %v1845 = vadd.f32 %v1840, 1e-06
    %v1846 = vrcp.pop %v1844
    %v1847 = vrcp.pop %v1845
    %v1848 = vmul.f32 %v1842, %v1846
    %v1849 = vmul.f32 %v1843, %v1847
    %v1850 = vperm.slane %v1032, 3
    %v1851 = vadd.f32 %v1848, %v1850
    %v1852 = vadd.f32 %v1849, %v1850
    %s1853 = scalar_lea.vmem %s4, 32
    %v1854 = vld [vmem:[%s1853] sm:$0xff]
    %v1855 = vld [vmem:[%s1853 + $0x8] sm:$0xff]
    %v1856 = vld [vmem:[%s1853 + $0x10] sm:$0xff]
    %v1857 = vld [vmem:[%s1853 + $0x18] sm:$0xff]
    %s1858 = scalar_lea.vmem %s9, 1
    %v1859 = vld [vmem:[%s1858] sm:$0x1]
    %v1861 = vperm.slane %v1859, 0
    %v1864 = vsel %vm118, %v1851, 0
    %v1867 = vsel %vm118, %v1852, 0
    %1869 = vmatpush.msra.mxu0 0.0
    %1870 = vmatpush.msra.mxu0 0.0
    %1871 = vmatpush.msra.mxu0 0.0
    %1872 = vmatpush.msra.mxu0 0.0
    %1873 = vmatpush.msra.mxu0 0.0
    %1874 = vmatpush.msra.mxu0 0.0
    %1875 = vmatpush.msra.mxu0 0.0
    %1876 = vmatpush.msra.mxu0 0.0
    %1877 = vmatpush.msra.mxu0 0.0
    %1878 = vmatpush.msra.mxu0 0.0
    %1879 = vmatpush.msra.mxu0 0.0
    %1880 = vmatpush.msra.mxu0 0.0
    %1881 = vmatpush.msra.mxu0 %v1857
    %1882 = vmatpush.msra.mxu0 %v1856
    %1883 = vmatpush.msra.mxu0 %v1855
    %1884 = vmatpush.msra.mxu0 %v1854
    %1885 = vmatmul.f32.gmra.mxu0 %v1864
    %v1886 = vpop.f32.mrf.mxu0
    %v1887 = vadd.f32 %v1861, %v1886
    %1888 = vmatmul.f32.gmra.mxu0 %v1867
    %v1889 = vpop.f32.mrf.mxu0
    %v1890 = vadd.f32 %v1861, %v1889
    %1891 = vdwg.mxu0
    %v1892 = vmax.f32 %v1887, 0.0
    %v1893 = vmax.f32 %v1890, 0.0
    %s1894 = scalar_lea.vmem %s5, 64
    %v1895 = vld [vmem:[%s1894] sm:$0xff]
    %v1896 = vld [vmem:[%s1894 + $0x8] sm:$0xff]
    %v1897 = vld [vmem:[%s1894 + $0x10] sm:$0xff]
    %v1898 = vld [vmem:[%s1894 + $0x18] sm:$0xff]
    %v1899 = vld [vmem:[%s1894 + $0x20] sm:$0xff]
    %v1900 = vld [vmem:[%s1894 + $0x28] sm:$0xff]
    %v1901 = vld [vmem:[%s1894 + $0x30] sm:$0xff]
    %v1902 = vld [vmem:[%s1894 + $0x38] sm:$0xff]
    %v1904 = vsel %vm996, %v1892, 0
    %v1907 = vsel %vm996, %v1893, 0
    %1909 = vmatpush.msra.mxu0 0.0
    %1910 = vmatpush.msra.mxu0 0.0
    %1911 = vmatpush.msra.mxu0 0.0
    %1912 = vmatpush.msra.mxu0 0.0
    %1913 = vmatpush.msra.mxu0 0.0
    %1914 = vmatpush.msra.mxu0 0.0
    %1915 = vmatpush.msra.mxu0 0.0
    %1916 = vmatpush.msra.mxu0 0.0
    %1917 = vmatpush.msra.mxu0 %v1902
    %1918 = vmatpush.msra.mxu0 %v1901
    %1919 = vmatpush.msra.mxu0 %v1900
    %1920 = vmatpush.msra.mxu0 %v1899
    %1921 = vmatpush.msra.mxu0 %v1898
    %1922 = vmatpush.msra.mxu0 %v1897
    %1923 = vmatpush.msra.mxu0 %v1896
    %1924 = vmatpush.msra.mxu0 %v1895
    %1925 = vmatmul.f32.gmra.mxu0 %v1904
    %v1926 = vpop.f32.mrf.mxu0
    %v1927 = vadd.f32 0.0, %v1926
    %1928 = vmatmul.f32.gmra.mxu0 %v1907
    %v1929 = vpop.f32.mrf.mxu0
    %v1930 = vadd.f32 0.0, %v1929
    %1931 = vdwg.mxu0
    %v1932 = vadd.f32 %v1795, %v1927
    %v1933 = vadd.f32 %v1796, %v1930
    %v1934 = vperm.slane %v1034, 1
    %v1935 = vadd.f32 %v1932, %v1934
    %v1936 = vadd.f32 %v1933, %v1934
    %v1937 = vld [vmem:[%s10] sm:$0x1]
    %v1938 = vld [vmem:[%s10 + $0x1] sm:$0x1]
    %v1939 = vsel %vm118, %v1935, 0.0
    %1940 = vadd.xlane.f32.xlu0 %v1939
    %v1941 = vpop.xlane.xlu0 %1940
    %v1942 = vsel %vm118, %v1936, 0.0
    %1943 = vadd.xlane.f32.xlu0 %v1942
    %v1944 = vpop.xlane.xlu0 %1943
    %v1945 = vmul.f32 %v1941, %v131
    %v1946 = vmul.f32 %v1944, %v131
    %v1947 = vsub.f32 %v1935, %v1945
    %v1948 = vsub.f32 %v1936, %v1946
    %v1949 = vmul.f32 %v1947, %v1947
    %v1950 = vmul.f32 %v1948, %v1948
    %v1951 = vsel %vm118, %v1949, 0.0
    %1952 = vadd.xlane.f32.xlu0 %v1951
    %v1953 = vpop.xlane.xlu0 %1952
    %v1954 = vsel %vm118, %v1950, 0.0
    %1955 = vadd.xlane.f32.xlu0 %v1954
    %v1956 = vpop.xlane.xlu0 %1955
    %v1957 = vmul.f32 %v1953, %v150
    %v1958 = vmul.f32 %v1956, %v150
    %v1959 = vrsqrt.pop %v1957
    %v1960 = vmul.f32 %v1959, %v1957
    %v1961 = vmul.f32 %v1960, %v1959
    %v1962 = vmul.f32 0.5, %v1961
    %v1963 = vsub.f32 1.5, %v1962
    %v1964 = vmul.f32 %v1959, %v1963
    %v1965 = vmul.f32 %v1957, %v1964
    %vm1966 = vcmp.eq.f32.partialorder %v1957, inf
    %v1967 = vsel %vm1966, %v1957, %v1965
    %vm1968 = vcmp.eq.f32.partialorder %v1957, 0.0
    %v1969 = vand.u32 %v1957, 2147483648
    %v1970 = vsel %vm1968, %v1969, %v1967
    %v1971 = vrsqrt.pop %v1958
    %v1972 = vmul.f32 %v1971, %v1958
    %v1973 = vmul.f32 %v1972, %v1971
    %v1974 = vmul.f32 0.5, %v1973
    %v1975 = vsub.f32 1.5, %v1974
    %v1976 = vmul.f32 %v1971, %v1975
    %v1977 = vmul.f32 %v1958, %v1976
    %vm1978 = vcmp.eq.f32.partialorder %v1958, inf
    %v1979 = vsel %vm1978, %v1958, %v1977
    %vm1980 = vcmp.eq.f32.partialorder %v1958, 0.0
    %v1981 = vand.u32 %v1958, 2147483648
    %v1982 = vsel %vm1980, %v1981, %v1979
    %v1983 = vperm.slane %v1937, 0
    %v1984 = vmul.f32 %v1983, %v1947
    %v1985 = vmul.f32 %v1983, %v1948
    %v1986 = vadd.f32 %v1970, 1e-06
    %v1987 = vadd.f32 %v1982, 1e-06
    %v1988 = vrcp.pop %v1986
    %v1989 = vrcp.pop %v1987
    %v1990 = vmul.f32 %v1984, %v1988
    %v1991 = vmul.f32 %v1985, %v1989
    %v1992 = vperm.slane %v1938, 0
    %v1993 = vadd.f32 %v1990, %v1992
    %v1994 = vadd.f32 %v1991, %v1992
    %1995 = vst.msk [vmem:[#allocation10] sm:$0xff] %vm118, %v1993
    %1996 = vst.msk [vmem:[#allocation10 + $0x8] sm:$0xff] %vm118, %v1994
    // Predicated region
    $region62: #{encoder_forward.1} parent=1 // pred_check
      _
    $region63: #{encoder_forward.1} parent=1 // pred_check_branch
      %1998 = sbr.rel (0) target = $region65
    $region64: #{encoder_forward.1} parent=1 // pred_region
      %2000 = vsyncadd [#allocation4], 0
      %s2001 = sshll.u32 [#allocation10], 4
      %s2002 = int_to_ptr.vmem [resolvable:$true] %s2001
      %s2003 = sshll.u32 %s11, 4
      %s2004 = int_to_ptr.hbm [resolvable:$true] %s2003
      %2009 = dma.vmem_to_hbm [thread:$0]  %s2002, 256, %s2004, [#allocation4], 128, 128, 8
    $region65: #{encoder_forward.1} parent=1 // pred_fallthru
      _
    // Predicated region
    $region66: #{encoder_forward.1} parent=1 // pred_check
      _
    $region67: #{encoder_forward.1} parent=1 // pred_check_branch
      %2011 = sbr.rel (0) target = $region69
    $region68: #{encoder_forward.1} parent=1 // pred_region
      %2013 = dma.done [#allocation4], 256
    $region69: #{encoder_forward.1} parent=1 // pred_fallthru
      _
    %2014 = vsyncpa [#allocation3], 1
    %2015 = vsyncpa [#allocation6], 1
    %2016 = vsyncpa [#allocation9], 1
    %2017 = vsyncpa [#allocation4], 1

</llo_original>
